<compile_context>
chip_gen: v7x
topology: tpu7x:2x2x1
jax: 0.10.0
libtpu: 0.0.40
codegen_flags: <defaults>
</compile_context>

<pallas_src>
import functools

import jax
import jax.numpy as jnp
from jax.experimental import pallas as pl
from jax.experimental.pallas import tpu as pltpu

D_IMG = 128          # stands in for the 1024 flattened-image dims of the original
NUM_CLASSES = 128    # stands in for 1000 classes
IN_DIM = D_IMG + NUM_CLASSES
HIDDEN = 128
ADAPT_LR = 0.01
META_LR = 1e-3       # unused: outer Adam step not implemented (see TODO above)
CLIP_NORM = 10.0


def _clip_grad(g, norm=CLIP_NORM):
    # Exact replica of MemoryMetaLearner.clip_grad's elementwise formula.
    g = g * (g < norm).astype(g.dtype) + (g > norm).astype(g.dtype) * norm
    g = g * (g > -norm).astype(g.dtype) - (g < -norm).astype(g.dtype) * norm
    return g


# ---------------------------------------------------------------------------
# Fused kernel: T inner-update steps + final meta loss, one pallas_call.
#   grid = (T,), "arbitrary" (fast-weight carry makes it strictly sequential).
# ---------------------------------------------------------------------------
def fused_forward_kernel(x_traj_ref, w1_ref, b1_ref, w2_ref, b2_ref,
                         x_rand_ref, y_rand_ref,      # inputs
                         loss_ref,                    # output (SMEM scalar)
                         w2f, b2f,                    # VMEM scratch: fast weights
                         *, adapt_lr):
    k = pl.program_id(0)

    @pl.when(k == 0)
    def _init():
        w2f[...] = w2_ref[...]
        b2f[...] = b2_ref[...]

    w1 = w1_ref[...]
    b1 = b1_ref[...]

    # ---- inner update: loss = MSE(net(x), x); grad only w.r.t. (W2, b2) ----
    x = x_traj_ref[0]                                              # (B, IN_DIM)
    h = jnp.maximum(jnp.dot(x, w1, preferred_element_type=jnp.float32) + b1, 0.0)
    logits = jnp.dot(h, w2f[...], preferred_element_type=jnp.float32) + b2f[...]
    n_elems = logits.shape[0] * logits.shape[1]
    dlogits = (2.0 / n_elems) * (logits - x)                       # dMSE/dlogits
    # h^T @ dlogits without materializing the transpose: contract axis 0 of both.
    g_w2 = jax.lax.dot_general(h, dlogits, (((0,), (0,)), ((), ())),
                               preferred_element_type=jnp.float32)
    g_b2 = jnp.sum(dlogits, axis=0, keepdims=True)
    w2f[...] = w2f[...] - adapt_lr * _clip_grad(g_w2)
    b2f[...] = b2f[...] - adapt_lr * _clip_grad(g_b2)

    # ---- meta loss: only the final fast weights matter (earlier ones are dead) ----
    @pl.when(k == pl.num_programs(0) - 1)
    def _meta():
        xr = x_rand_ref[...]                                       # (B, IN_DIM)
        h2 = jnp.maximum(jnp.dot(xr, w1, preferred_element_type=jnp.float32) + b1, 0.0)
        lg = jnp.dot(h2, w2f[...], preferred_element_type=jnp.float32) + b2f[...]
        cls = lg[:, D_IMG:]                                        # == logits[:, 1024:]
        m = jnp.max(cls, axis=1, keepdims=True)
        lse = jnp.log(jnp.sum(jnp.exp(cls - m), axis=1, keepdims=True)) + m
        col = jax.lax.broadcasted_iota(jnp.int32, cls.shape, 1)
        onehot = (col == y_rand_ref[...]).astype(jnp.float32)      # built in-kernel
        picked = jnp.sum(cls * onehot, axis=1, keepdims=True)
        loss_ref[0, 0] = jnp.mean(lse - picked)                    # single scalar store


# ---------------------------------------------------------------------------
# MemoryMetaLearner.forward
# ---------------------------------------------------------------------------
@functools.partial(jax.jit, static_argnames=("adapt_lr",))
def memory_meta_learner_forward(x_traj, y_traj, x_rand, y_rand, params,
                                adapt_lr=ADAPT_LR):
    del y_traj  # inner_update overwrites y with deepcopy(x), so labels are unused
    w1, b1, w2, b2 = params
    T, B, in_dim = x_traj.shape
    assert T >= 2, "reference forward requires at least 2 trajectory steps"

    x_rand0 = x_rand[0]                                   # (B, IN_DIM)
    y_lab = y_rand[0].astype(jnp.int32).reshape(B, 1)     # tiny int labels, no one-hot

    kernel = functools.partial(fused_forward_kernel, adapt_lr=adapt_lr)
    grid_spec = pltpu.PrefetchScalarGridSpec(
        num_scalar_prefetch=0,
        grid=(T,),
        in_specs=[
            pl.BlockSpec((1, B, in_dim), lambda k: (k, 0, 0)),   # x_traj[k]
            pl.BlockSpec(w1.shape, lambda k: (0, 0)),            # meta weights:
            pl.BlockSpec(b1.shape, lambda k: (0, 0)),            #   constant index_map
            pl.BlockSpec(w2.shape, lambda k: (0, 0)),            #   → single DMA,
            pl.BlockSpec(b2.shape, lambda k: (0, 0)),            #   resident all grid
            pl.BlockSpec((B, in_dim), lambda k: (0, 0)),         # x_rand[0]
            pl.BlockSpec((B, 1), lambda k: (0, 0)),              # y_rand[0] labels
        ],
        out_specs=pl.BlockSpec(memory_space=pltpu.MemorySpace.SMEM),  # scalar loss
        scratch_shapes=[
            pltpu.VMEM(w2.shape, jnp.float32),   # fast W2 (persists across grid steps)
            pltpu.VMEM(b2.shape, jnp.float32),   # fast b2
        ],
    )
    loss = pl.pallas_call(
        kernel,
        out_shape=jax.ShapeDtypeStruct((1, 1), jnp.float32),
        grid_spec=grid_spec,
        compiler_params=pltpu.CompilerParams(
            dimension_semantics=("arbitrary",),   # sequential carry; no megacore split
            vmem_limit_bytes=32 * 1024 * 1024,
        ),
    )(x_traj, w1, b1, w2, b2, x_rand0, y_lab)
    # TODO(synk): outer Adam optimizer step (meta_lr) omitted.
    return loss[0, 0]


# ---------------------------------------------------------------------------
# Pure-JAX reference of the same forward pass (for a correctness check).
# ---------------------------------------------------------------------------
def _reference_forward(x_traj, x_rand, y_rand, params, adapt_lr=ADAPT_LR):
    w1, b1, w2, b2 = params
    w2f, b2f = w2, b2
    for k in range(x_traj.shape[0]):
        x = x_traj[k]
        h = jax.nn.relu(x @ w1 + b1)
        logits = h @ w2f + b2f
        d = (2.0 / logits.size) * (logits - x)
        w2f = w2f - adapt_lr * _clip_grad(h.T @ d)
        b2f = b2f - adapt_lr * _clip_grad(jnp.sum(d, axis=0, keepdims=True))
    xr = x_rand[0]
    h = jax.nn.relu(xr @ w1 + b1)
    cls = (h @ w2f + b2f)[:, D_IMG:]
    lse = jax.nn.logsumexp(cls, axis=1)
    picked = jnp.take_along_axis(cls, y_rand[0][:, None].astype(jnp.int32), axis=1)[:, 0]
    return jnp.mean(lse - picked)


if __name__ == "__main__":
    key = jax.random.PRNGKey(0)
    kw1, kw2, kimg_t, ky_t, kimg_r, ky_r = jax.random.split(key, 6)

    # Deterministic kaiming-style init (Learner shapes defined above).
    w1 = jax.random.normal(kw1, (IN_DIM, HIDDEN), jnp.float32) * jnp.sqrt(2.0 / IN_DIM)
    b1 = jnp.zeros((1, HIDDEN), jnp.float32)
    w2 = jax.random.normal(kw2, (HIDDEN, IN_DIM), jnp.float32) * jnp.sqrt(2.0 / HIDDEN)
    b2 = jnp.zeros((1, IN_DIM), jnp.float32)
    params = (w1, b1, w2, b2)

    T, B = 3, 8
    # Inputs mimic sample_training_data: x = [flattened image | one-hot(label)].
    y_traj = jax.random.randint(ky_t, (T, B), 0, NUM_CLASSES, dtype=jnp.int32)
    img_t = jax.random.normal(kimg_t, (T, B, D_IMG), jnp.float32)
    x_traj = jnp.concatenate(
        [img_t, jax.nn.one_hot(y_traj, NUM_CLASSES, dtype=jnp.float32)], axis=-1)

    y_rand = jax.random.randint(ky_r, (1, B), 0, NUM_CLASSES, dtype=jnp.int32)
    img_r = jax.random.normal(kimg_r, (1, B, D_IMG), jnp.float32)
    x_rand = jnp.concatenate(
        [img_r, jax.nn.one_hot(y_rand, NUM_CLASSES, dtype=jnp.float32)], axis=-1)

    loss = memory_meta_learner_forward(x_traj, y_traj, x_rand, y_rand, params)
    loss = jax.block_until_ready(loss)

    ref = _reference_forward(x_traj, x_rand, y_rand, params)
    if not jnp.allclose(loss, ref, rtol=2e-2, atol=2e-2):
        raise AssertionError(f"mismatch: pallas={float(loss)} ref={float(ref)}")
    print("KERNEL_OK")
</pallas_src>

<mosaic_0001>
module attributes {stable_mosaic.version = 11 : i64} {
  func.func @fused_forward_kernel(%arg0: i32, %arg1: memref<1x8x256xf32, #tpu.memory_space<vmem>>, %arg2: memref<256x128xf32, #tpu.memory_space<vmem>>, %arg3: memref<1x128xf32, #tpu.memory_space<vmem>>, %arg4: memref<128x256xf32, #tpu.memory_space<vmem>>, %arg5: memref<1x256xf32, #tpu.memory_space<vmem>>, %arg6: memref<8x256xf32, #tpu.memory_space<vmem>>, %arg7: memref<8x1xi32, #tpu.memory_space<vmem>>, %arg8: memref<1x1xf32, #tpu.memory_space<smem>>, %arg9: memref<128x256xf32, #tpu.memory_space<vmem>>, %arg10: memref<1x256xf32, #tpu.memory_space<vmem>>) attributes {dimension_semantics = [#tpu.dimension_semantics<arbitrary>], iteration_bounds = array<i64: 3>, scalar_prefetch = 0 : i64, scratch_operands = 2 : i64, tpu.core_type = #tpu.core_type<tc>, window_params = [{transform_indices = @transform_0, window_bounds = array<i64: 1, 8, 256>}, {pipeline_mode = #tpu.pipeline_mode<synchronous>, transform_indices = @transform_1, window_bounds = array<i64: 256, 128>}, {pipeline_mode = #tpu.pipeline_mode<synchronous>, transform_indices = @transform_2, window_bounds = array<i64: 1, 128>}, {pipeline_mode = #tpu.pipeline_mode<synchronous>, transform_indices = @transform_3, window_bounds = array<i64: 128, 256>}, {pipeline_mode = #tpu.pipeline_mode<synchronous>, transform_indices = @transform_4, window_bounds = array<i64: 1, 256>}, {pipeline_mode = #tpu.pipeline_mode<synchronous>, transform_indices = @transform_5, window_bounds = array<i64: 8, 256>}, {pipeline_mode = #tpu.pipeline_mode<synchronous>, transform_indices = @transform_6, window_bounds = array<i64: 8, 1>}, {transform_indices = @transform_7, window_bounds = array<i64: 1, 1>}]} {
    %c0_i32 = arith.constant 0 : i32
    %0 = arith.cmpi eq, %arg0, %c0_i32 : i32
    %1 = arith.extui %0 : i1 to i32
    %c0_i32_0 = arith.constant 0 : i32
    %2 = arith.cmpi ne, %1, %c0_i32_0 : i32
    scf.if %2 {
      %c0_39 = arith.constant 0 : index
      %c0_40 = arith.constant 0 : index
      %84 = vector.load %arg4[%c0_39, %c0_40] : memref<128x256xf32, #tpu.memory_space<vmem>>, vector<128x256xf32>
      %c0_41 = arith.constant 0 : index
      %c0_42 = arith.constant 0 : index
      %85 = vector.load %arg9[%c0_41, %c0_42] : memref<128x256xf32, #tpu.memory_space<vmem>>, vector<128x256xf32>
      tpu.vector_store %arg9[%c0_41, %c0_42], %84 {strides = array<i32>} : memref<128x256xf32, #tpu.memory_space<vmem>>, vector<128x256xf32>,
      %c0_43 = arith.constant 0 : index
      %c0_44 = arith.constant 0 : index
      %86 = vector.load %arg5[%c0_43, %c0_44] : memref<1x256xf32, #tpu.memory_space<vmem>>, vector<1x256xf32>
      %c0_45 = arith.constant 0 : index
      %c0_46 = arith.constant 0 : index
      %87 = vector.load %arg10[%c0_45, %c0_46] : memref<1x256xf32, #tpu.memory_space<vmem>>, vector<1x256xf32>
      tpu.vector_store %arg10[%c0_45, %c0_46], %86 {strides = array<i32>} : memref<1x256xf32, #tpu.memory_space<vmem>>, vector<1x256xf32>,
    } else {
    }
    %c0 = arith.constant 0 : index
    %c0_1 = arith.constant 0 : index
    %3 = vector.load %arg2[%c0, %c0_1] : memref<256x128xf32, #tpu.memory_space<vmem>>, vector<256x128xf32>
    %c0_2 = arith.constant 0 : index
    %c0_3 = arith.constant 0 : index
    %4 = vector.load %arg3[%c0_2, %c0_3] : memref<1x128xf32, #tpu.memory_space<vmem>>, vector<1x128xf32>
    %c0_4 = arith.constant 0 : index
    %c0_5 = arith.constant 0 : index
    %c0_6 = arith.constant 0 : index
    %5 = vector.load %arg1[%c0_4, %c0_5, %c0_6] : memref<1x8x256xf32, #tpu.memory_space<vmem>>, vector<1x8x256xf32>
    %6 = vector.shape_cast %5 : vector<1x8x256xf32> to vector<8x256xf32>
    %cst = arith.constant dense<0.000000e+00> : vector<8x128xf32>
    %7 = tpu.matmul %6, %3, %cst {dimension_numbers = #tpu.dot_dimension_numbers<[1], [0], [0], [1], [0, 0, 1, 1], [], []>} : vector<8x256xf32>, vector<256x128xf32>, vector<8x128xf32> -> vector<8x128xf32>
    %8 = vector.broadcast %4 : vector<1x128xf32> to vector<8x128xf32>
    %9 = arith.addf %7, %8 : vector<8x128xf32>
    %cst_7 = arith.constant 0.000000e+00 : f32
    %10 = vector.broadcast %cst_7 : f32 to vector<8x128xf32>
    %11 = arith.maximumf %9, %10 : vector<8x128xf32>
    %c0_8 = arith.constant 0 : index
    %c0_9 = arith.constant 0 : index
    %12 = vector.load %arg9[%c0_8, %c0_9] : memref<128x256xf32, #tpu.memory_space<vmem>>, vector<128x256xf32>
    %cst_10 = arith.constant dense<0.000000e+00> : vector<8x256xf32>
    %13 = tpu.matmul %11, %12, %cst_10 {dimension_numbers = #tpu.dot_dimension_numbers<[1], [0], [0], [1], [0, 0, 1, 1], [], []>} : vector<8x128xf32>, vector<128x256xf32>, vector<8x256xf32> -> vector<8x256xf32>
    %c0_11 = arith.constant 0 : index
    %c0_12 = arith.constant 0 : index
    %14 = vector.load %arg10[%c0_11, %c0_12] : memref<1x256xf32, #tpu.memory_space<vmem>>, vector<1x256xf32>
    %15 = vector.broadcast %14 : vector<1x256xf32> to vector<8x256xf32>
    %16 = arith.addf %13, %15 : vector<8x256xf32>
    %17 = arith.subf %16, %6 : vector<8x256xf32>
    %cst_13 = arith.constant 9.765625E-4 : f32
    %18 = vector.broadcast %cst_13 : f32 to vector<8x256xf32>
    %19 = arith.mulf %18, %17 : vector<8x256xf32>
    %cst_14 = arith.constant dense<0.000000e+00> : vector<128x256xf32>
    %20 = tpu.matmul %11, %19, %cst_14 {dimension_numbers = #tpu.dot_dimension_numbers<[0], [0], [1], [1], [0, 1, 1, 1], [], []>} : vector<8x128xf32>, vector<8x256xf32>, vector<128x256xf32> -> vector<128x256xf32>
    %cst_15 = arith.constant dense<0.000000e+00> : vector<256xf32>
    %21 = vector.multi_reduction <add>, %19, %cst_15 [0] : vector<8x256xf32> to vector<256xf32>
    %22 = vector.shape_cast %21 : vector<256xf32> to vector<1x256xf32>
    %c0_16 = arith.constant 0 : index
    %c0_17 = arith.constant 0 : index
    %23 = vector.load %arg9[%c0_16, %c0_17] : memref<128x256xf32, #tpu.memory_space<vmem>>, vector<128x256xf32>
    %cst_18 = arith.constant 1.000000e+01 : f32
    %24 = vector.broadcast %cst_18 : f32 to vector<128x256xf32>
    %25 = arith.cmpf olt, %20, %24 : vector<128x256xf32>
    %26 = arith.extui %25 : vector<128x256xi1> to vector<128x256xi32>
    %27 = arith.sitofp %26 : vector<128x256xi32> to vector<128x256xf32>
    %28 = arith.mulf %20, %27 : vector<128x256xf32>
    %cst_19 = arith.constant 1.000000e+01 : f32
    %29 = vector.broadcast %cst_19 : f32 to vector<128x256xf32>
    %30 = arith.cmpf ogt, %20, %29 : vector<128x256xf32>
    %31 = arith.extui %30 : vector<128x256xi1> to vector<128x256xi32>
    %32 = arith.sitofp %31 : vector<128x256xi32> to vector<128x256xf32>
    %cst_20 = arith.constant 1.000000e+01 : f32
    %33 = vector.broadcast %cst_20 : f32 to vector<128x256xf32>
    %34 = arith.mulf %32, %33 : vector<128x256xf32>
    %35 = arith.addf %28, %34 : vector<128x256xf32>
    %cst_21 = arith.constant -1.000000e+01 : f32
    %36 = vector.broadcast %cst_21 : f32 to vector<128x256xf32>
    %37 = arith.cmpf ogt, %35, %36 : vector<128x256xf32>
    %38 = arith.extui %37 : vector<128x256xi1> to vector<128x256xi32>
    %39 = arith.sitofp %38 : vector<128x256xi32> to vector<128x256xf32>
    %40 = arith.mulf %35, %39 : vector<128x256xf32>
    %cst_22 = arith.constant -1.000000e+01 : f32
    %41 = vector.broadcast %cst_22 : f32 to vector<128x256xf32>
    %42 = arith.cmpf olt, %35, %41 : vector<128x256xf32>
    %43 = arith.extui %42 : vector<128x256xi1> to vector<128x256xi32>
    %44 = arith.sitofp %43 : vector<128x256xi32> to vector<128x256xf32>
    %cst_23 = arith.constant 1.000000e+01 : f32
    %45 = vector.broadcast %cst_23 : f32 to vector<128x256xf32>
    %46 = arith.mulf %44, %45 : vector<128x256xf32>
    %47 = arith.subf %40, %46 : vector<128x256xf32>
    %cst_24 = arith.constant 0.00999999977 : f32
    %48 = vector.broadcast %cst_24 : f32 to vector<128x256xf32>
    %49 = arith.mulf %48, %47 : vector<128x256xf32>
    %50 = arith.subf %23, %49 : vector<128x256xf32>
    %c0_25 = arith.constant 0 : index
    %c0_26 = arith.constant 0 : index
    %51 = vector.load %arg9[%c0_25, %c0_26] : memref<128x256xf32, #tpu.memory_space<vmem>>, vector<128x256xf32>
    tpu.vector_store %arg9[%c0_25, %c0_26], %50 {strides = array<i32>} : memref<128x256xf32, #tpu.memory_space<vmem>>, vector<128x256xf32>,
    %c0_27 = arith.constant 0 : index
    %c0_28 = arith.constant 0 : index
    %52 = vector.load %arg10[%c0_27, %c0_28] : memref<1x256xf32, #tpu.memory_space<vmem>>, vector<1x256xf32>
    %cst_29 = arith.constant 1.000000e+01 : f32
    %53 = vector.broadcast %cst_29 : f32 to vector<1x256xf32>
    %54 = arith.cmpf olt, %22, %53 : vector<1x256xf32>
    %55 = arith.extui %54 : vector<1x256xi1> to vector<1x256xi32>
    %56 = arith.sitofp %55 : vector<1x256xi32> to vector<1x256xf32>
    %57 = arith.mulf %22, %56 : vector<1x256xf32>
    %cst_30 = arith.constant 1.000000e+01 : f32
    %58 = vector.broadcast %cst_30 : f32 to vector<1x256xf32>
    %59 = arith.cmpf ogt, %22, %58 : vector<1x256xf32>
    %60 = arith.extui %59 : vector<1x256xi1> to vector<1x256xi32>
    %61 = arith.sitofp %60 : vector<1x256xi32> to vector<1x256xf32>
    %cst_31 = arith.constant 1.000000e+01 : f32
    %62 = vector.broadcast %cst_31 : f32 to vector<1x256xf32>
    %63 = arith.mulf %61, %62 : vector<1x256xf32>
    %64 = arith.addf %57, %63 : vector<1x256xf32>
    %cst_32 = arith.constant -1.000000e+01 : f32
    %65 = vector.broadcast %cst_32 : f32 to vector<1x256xf32>
    %66 = arith.cmpf ogt, %64, %65 : vector<1x256xf32>
    %67 = arith.extui %66 : vector<1x256xi1> to vector<1x256xi32>
    %68 = arith.sitofp %67 : vector<1x256xi32> to vector<1x256xf32>
    %69 = arith.mulf %64, %68 : vector<1x256xf32>
    %cst_33 = arith.constant -1.000000e+01 : f32
    %70 = vector.broadcast %cst_33 : f32 to vector<1x256xf32>
    %71 = arith.cmpf olt, %64, %70 : vector<1x256xf32>
    %72 = arith.extui %71 : vector<1x256xi1> to vector<1x256xi32>
    %73 = arith.sitofp %72 : vector<1x256xi32> to vector<1x256xf32>
    %cst_34 = arith.constant 1.000000e+01 : f32
    %74 = vector.broadcast %cst_34 : f32 to vector<1x256xf32>
    %75 = arith.mulf %73, %74 : vector<1x256xf32>
    %76 = arith.subf %69, %75 : vector<1x256xf32>
    %cst_35 = arith.constant 0.00999999977 : f32
    %77 = vector.broadcast %cst_35 : f32 to vector<1x256xf32>
    %78 = arith.mulf %77, %76 : vector<1x256xf32>
    %79 = arith.subf %52, %78 : vector<1x256xf32>
    %c0_36 = arith.constant 0 : index
    %c0_37 = arith.constant 0 : index
    %80 = vector.load %arg10[%c0_36, %c0_37] : memref<1x256xf32, #tpu.memory_space<vmem>>, vector<1x256xf32>
    tpu.vector_store %arg10[%c0_36, %c0_37], %79 {strides = array<i32>} : memref<1x256xf32, #tpu.memory_space<vmem>>, vector<1x256xf32>,
    %c2_i32 = arith.constant 2 : i32
    %81 = arith.cmpi eq, %arg0, %c2_i32 : i32
    %82 = arith.extui %81 : i1 to i32
    %c0_i32_38 = arith.constant 0 : i32
    %83 = arith.cmpi ne, %82, %c0_i32_38 : i32
    scf.if %83 {
      %c0_39 = arith.constant 0 : index
      %c0_40 = arith.constant 0 : index
      %84 = vector.load %arg6[%c0_39, %c0_40] : memref<8x256xf32, #tpu.memory_space<vmem>>, vector<8x256xf32>
      %cst_41 = arith.constant dense<0.000000e+00> : vector<8x128xf32>
      %85 = tpu.matmul %84, %3, %cst_41 {dimension_numbers = #tpu.dot_dimension_numbers<[1], [0], [0], [1], [0, 0, 1, 1], [], []>} : vector<8x256xf32>, vector<256x128xf32>, vector<8x128xf32> -> vector<8x128xf32>
      %86 = vector.broadcast %4 : vector<1x128xf32> to vector<8x128xf32>
      %87 = arith.addf %85, %86 : vector<8x128xf32>
      %cst_42 = arith.constant 0.000000e+00 : f32
      %88 = vector.broadcast %cst_42 : f32 to vector<8x128xf32>
      %89 = arith.maximumf %87, %88 : vector<8x128xf32>
      %c0_43 = arith.constant 0 : index
      %c0_44 = arith.constant 0 : index
      %90 = vector.load %arg9[%c0_43, %c0_44] : memref<128x256xf32, #tpu.memory_space<vmem>>, vector<128x256xf32>
      %cst_45 = arith.constant dense<0.000000e+00> : vector<8x256xf32>
      %91 = tpu.matmul %89, %90, %cst_45 {dimension_numbers = #tpu.dot_dimension_numbers<[1], [0], [0], [1], [0, 0, 1, 1], [], []>} : vector<8x128xf32>, vector<128x256xf32>, vector<8x256xf32> -> vector<8x256xf32>
      %c0_46 = arith.constant 0 : index
      %c0_47 = arith.constant 0 : index
      %92 = vector.load %arg10[%c0_46, %c0_47] : memref<1x256xf32, #tpu.memory_space<vmem>>, vector<1x256xf32>
      %93 = vector.broadcast %92 : vector<1x256xf32> to vector<8x256xf32>
      %94 = arith.addf %91, %93 : vector<8x256xf32>
      %95 = vector.extract_strided_slice %94 {offsets = [0, 128], sizes = [8, 128], strides = [1, 1]} : vector<8x256xf32> to vector<8x128xf32>
      %cst_48 = arith.constant dense<0xFF800000> : vector<8xf32>
      %96 = vector.multi_reduction <maximumf>, %95, %cst_48 [1] : vector<8x128xf32> to vector<8xf32>
      %97 = vector.shape_cast %96 : vector<8xf32> to vector<8x1xf32>
      %98 = vector.broadcast %97 : vector<8x1xf32> to vector<8x128xf32>
      %99 = arith.subf %95, %98 : vector<8x128xf32>
      %100 = math.exp %99 : vector<8x128xf32>
      %cst_49 = arith.constant dense<0.000000e+00> : vector<8xf32>
      %101 = vector.multi_reduction <add>, %100, %cst_49 [1] : vector<8x128xf32> to vector<8xf32>
      %102 = vector.shape_cast %101 : vector<8xf32> to vector<8x1xf32>
      %103 = math.log %102 : vector<8x1xf32>
      %104 = arith.addf %103, %97 : vector<8x1xf32>
      %105 = tpu.iota {dimensions = array<i32: 1>} : vector<8x128xi32>
      %c0_50 = arith.constant 0 : index
      %c0_51 = arith.constant 0 : index
      %106 = vector.load %arg7[%c0_50, %c0_51] : memref<8x1xi32, #tpu.memory_space<vmem>>, vector<8x1xi32>
      %107 = vector.broadcast %106 : vector<8x1xi32> to vector<8x128xi32>
      %108 = arith.cmpi eq, %105, %107 : vector<8x128xi32>
      %109 = arith.extui %108 : vector<8x128xi1> to vector<8x128xi32>
      %110 = arith.sitofp %109 : vector<8x128xi32> to vector<8x128xf32>
      %111 = arith.mulf %95, %110 : vector<8x128xf32>
      %cst_52 = arith.constant dense<0.000000e+00> : vector<8xf32>
      %112 = vector.multi_reduction <add>, %111, %cst_52 [1] : vector<8x128xf32> to vector<8xf32>
      %113 = vector.shape_cast %112 : vector<8xf32> to vector<8x1xf32>
      %114 = arith.subf %104, %113 : vector<8x1xf32>
      %115 = vector.shape_cast %114 : vector<8x1xf32> to vector<1x8x1xf32>
      %cst_53 = arith.constant dense<0.000000e+00> : vector<1xf32>
      %116 = vector.multi_reduction <add>, %115, %cst_53 [1, 2] : vector<1x8x1xf32> to vector<1xf32>
      %117 = vector.shape_cast %116 : vector<1xf32> to vector<1x1x1xf32>
      %118 = vector.extract %117[0, 0, 0] : f32 from vector<1x1x1xf32>
      %cst_54 = arith.constant 8.000000e+00 : f32
      %119 = arith.divf %118, %cst_54 : f32
      %c0_55 = arith.constant 0 : index
      %c0_56 = arith.constant 0 : index
      %120 = memref.load %arg8[%c0_55, %c0_56] : memref<1x1xf32, #tpu.memory_space<smem>>
      memref.store %119, %arg8[%c0_55, %c0_56] : memref<1x1xf32, #tpu.memory_space<smem>>
    } else {
    }
    return
  }
  func.func @transform_0(%arg0: i32) -> (i32, i32, i32) {
    %c0_i32 = arith.constant 0 : i32
    %c0_i32_0 = arith.constant 0 : i32
    %c0_i32_1 = arith.constant 0 : i32
    return %arg0, %c0_i32, %c0_i32_0 : i32, i32, i32
  }
  func.func @transform_1(%arg0: i32) -> (i32, i32) {
    %c0_i32 = arith.constant 0 : i32
    %c0_i32_0 = arith.constant 0 : i32
    %c0_i32_1 = arith.constant 0 : i32
    return %c0_i32, %c0_i32_0 : i32, i32
  }
  func.func @transform_2(%arg0: i32) -> (i32, i32) {
    %c0_i32 = arith.constant 0 : i32
    %c0_i32_0 = arith.constant 0 : i32
    %c0_i32_1 = arith.constant 0 : i32
    return %c0_i32, %c0_i32_0 : i32, i32
  }
  func.func @transform_3(%arg0: i32) -> (i32, i32) {
    %c0_i32 = arith.constant 0 : i32
    %c0_i32_0 = arith.constant 0 : i32
    %c0_i32_1 = arith.constant 0 : i32
    return %c0_i32, %c0_i32_0 : i32, i32
  }
  func.func @transform_4(%arg0: i32) -> (i32, i32) {
    %c0_i32 = arith.constant 0 : i32
    %c0_i32_0 = arith.constant 0 : i32
    %c0_i32_1 = arith.constant 0 : i32
    return %c0_i32, %c0_i32_0 : i32, i32
  }
  func.func @transform_5(%arg0: i32) -> (i32, i32) {
    %c0_i32 = arith.constant 0 : i32
    %c0_i32_0 = arith.constant 0 : i32
    %c0_i32_1 = arith.constant 0 : i32
    return %c0_i32, %c0_i32_0 : i32, i32
  }
  func.func @transform_6(%arg0: i32) -> (i32, i32) {
    %c0_i32 = arith.constant 0 : i32
    %c0_i32_0 = arith.constant 0 : i32
    %c0_i32_1 = arith.constant 0 : i32
    return %c0_i32, %c0_i32_0 : i32, i32
  }
  func.func @transform_7(%arg0: i32) -> (i32, i32) {
    %c0_i32 = arith.constant 0 : i32
    %c0_i32_0 = arith.constant 0 : i32
    %c0_i32_1 = arith.constant 0 : i32
    return %c0_i32, %c0_i32_0 : i32, i32
  }
}

</mosaic_0001>

<llo_original>
// kernel: memory_meta_learner_forward.1
$region0: #{memory_meta_learner_forward.1}
  #allocation0 [shape = 'u32[]', space=smem, size = 0x4, offset = 0x4, fixed_abs, tag = 'smem constant byte address 0x4 - core index']
  #allocation1 [shape = 'u32[144,128]{1,0:T(1,128)}', space=vmem, size = 0x12000, scoped, tag = 'internal scratch']
  #allocation2 [shape = 'f32[128,256]{1,0:T(8,128)}', space=vmem, size = 0x20000, scoped, tag = 'scratch operand']
  #allocation3 [shape = 'f32[1,256]{1,0:T(1,128)}', space=vmem, size = 0x400, scoped, tag = 'scratch operand']
  %s0 = inlined_call_operand.hbm [shape: f32[3,8,256], index: 0, kind: input, shape index: {}]
  %s1 = inlined_call_operand.hbm [shape: f32[256,128], index: 1, kind: input, shape index: {}]
  %s2 = inlined_call_operand.vmem [shape: f32[1,128], index: 2, kind: input, shape index: {}]
  %s3 = inlined_call_operand.hbm [shape: f32[128,256], index: 3, kind: input, shape index: {}]
  %s4 = inlined_call_operand.vmem [shape: f32[1,256], index: 4, kind: input, shape index: {}]
  %s5 = inlined_call_operand.vmem [shape: f32[8,256], index: 5, kind: input, shape index: {}]
  %s6 = inlined_call_operand.vmem [shape: s32[8,1], index: 6, kind: input, shape index: {}]
  %s7 = inlined_call_operand.hbm [shape: f32[1,1], index: 7, kind: output, shape index: {}]
  %s8 = sld [smem:[#allocation0]]
  $region81: #{memory_meta_learner_forward.1} parent=0
    _
  %s10 = ssub.s32 1, %s8
  %s11 = scalar_select 0, %s10, %s8
  $region1: #{memory_meta_learner_forward.1} parent=0
    #allocation4 [shape = 'u8[16384]{0}', space=vmem, size = 0x4000, scoped, tag = 'input window, operand 0']
    #allocation5 [shape = 's32[2]{0}', space=sflag, size = 0x8, scoped, tag = 'scoped memory for memory_meta_learner_forward.1']
    #allocation6 [shape = 's32[2]{0}', space=sflag, size = 0x8, scoped, tag = 'scoped memory for memory_meta_learner_forward.1']
    #allocation7 [shape = 'u8[131072]{0}', space=vmem, size = 0x20000, scoped, tag = 'input window, operand 1, single buffered']
    #allocation8 [shape = 's32[1]{0}', space=sflag, size = 0x4, scoped, tag = 'scoped memory for memory_meta_learner_forward.1']
    #allocation9 [shape = 'u8[131072]{0}', space=vmem, size = 0x20000, scoped, tag = 'input window, operand 3, single buffered']
    #allocation10 [shape = 'u8[512]{0}', space=smem, size = 0x200, scoped, tag = 'output window, operand 0, single buffered']
    %12 = vsyncpa [#allocation5], 0
    %s13 = scalar_lea.sflag [#allocation5], 1
    %14 = vsyncpa %s13, 0
    %15 = vsyncpa [#allocation8], 0
    %16 = vsyncpa [#allocation6], 0
    loop: start=0, step=1, limit=5
    $region2: #{memory_meta_learner_forward.1} parent=1 // loop_pre_header
      _
    $region3: #{memory_meta_learner_forward.1} parent=1 // loop_header
      %s18 = sphi 0, %s22
      %p19 = scmp.ge.s32.totalorder %s18, 5
      %s28 = sphi 0, %s30
      %s31 = sphi 0, %s28
      %s32 = sphi 0, %s31
      %s48 = sphi 0, %s32
      %s52 = sphi 0, %s52
      %s54 = sphi 0, %s52
      %s55 = sphi 0, %s54
      %s69 = sphi 0, %s55
      %s73 = sphi 0, %s73
      %s75 = sphi 0, %s73
      %s76 = sphi 0, %s75
      %s90 = sphi 0, %s76
      %s94 = sphi 0, %s94
      %s96 = sphi 0, %s94
      %s97 = sphi 0, %s96
      %s111 = sphi 0, %s97
      %s115 = sphi 0, %s115
      %s117 = sphi 0, %s115
      %s118 = sphi 0, %s117
      %s132 = sphi 0, %s118
      %s136 = sphi 0, %s136
      %s138 = sphi 0, %s136
      %s139 = sphi 0, %s138
      %s153 = sphi 0, %s139
      %s157 = sphi 0, %s157
      %s159 = sphi 0, %s157
      %s160 = sphi 0, %s159
      %s174 = sphi 0, %s160
      %s178 = sphi 0, %s178
      %s180 = sphi 0, %s178
      %s181 = sphi 0, %s180
      %s195 = sphi 0, %s181
    $region4: #{memory_meta_learner_forward.1} parent=1 // loop_header_branch
      %21 = sbr.rel (%p19) target = $region8
    $region5: #{memory_meta_learner_forward.1} parent=1 // loop_body
      %s23 = ssub.s32 %s18, 1
      %s24 = ssub.s32 %s18, 2
      %s25 = sadd.s32 %s18, 1
      %s26 = ssub.s32 %s18, %s25
      %p27 = scmp.eq.s32.totalorder %s26, 0
      %s29 = sadd.s32 %s28, 1
      %s30 = scalar_select %p27, %s28, %s29
      %p33 = pneg %p27
      %p34 = scmp.eq.s32.totalorder %s18, 2
      %p35 = por %p33, %p34
      %p36 = scmp.ne.s32.totalorder %s28, %s31
      %p37 = scmp.eq.s32.totalorder %s18, 0
      %p38 = por %p36, %p37
      %p39 = scmp.ne.s32.totalorder %s28, %s31
      %p40 = scmp.eq.s32.totalorder %s23, 2
      %p41 = por %p39, %p40
      %p42 = scmp.ne.s32.totalorder %s31, %s32
      %p43 = scmp.eq.s32.totalorder %s23, 0
      %p44 = por %p42, %p43
      %p45 = scmp.ne.s32.totalorder %s31, %s32
      %p46 = scmp.eq.s32.totalorder %s24, 2
      %p47 = por %p45, %p46
      %p49 = scmp.ne.s32.totalorder %s32, %s48
      %p50 = scmp.eq.s32.totalorder %s24, 0
      %p51 = por %p49, %p50
      %s53 = sadd.s32 %s52, 1
      %p56 = scmp.eq.s32.totalorder %s18, 2
      %p57 = scmp.ne.s32.totalorder %s52, %s54
      %p58 = scmp.eq.s32.totalorder %s18, 0
      %p59 = por %p57, %p58
      %p60 = scmp.ne.s32.totalorder %s52, %s54
      %p61 = scmp.eq.s32.totalorder %s23, 2
      %p62 = por %p60, %p61
      %p63 = scmp.ne.s32.totalorder %s54, %s55
      %p64 = scmp.eq.s32.totalorder %s23, 0
      %p65 = por %p63, %p64
      %p66 = scmp.ne.s32.totalorder %s54, %s55
      %p67 = scmp.eq.s32.totalorder %s24, 2
      %p68 = por %p66, %p67
      %p70 = scmp.ne.s32.totalorder %s55, %s69
      %p71 = scmp.eq.s32.totalorder %s24, 0
      %p72 = por %p70, %p71
      %s74 = sadd.s32 %s73, 1
      %p77 = scmp.eq.s32.totalorder %s18, 2
      %p78 = scmp.ne.s32.totalorder %s73, %s75
      %p79 = scmp.eq.s32.totalorder %s18, 0
      %p80 = por %p78, %p79
      %p81 = scmp.ne.s32.totalorder %s73, %s75
      %p82 = scmp.eq.s32.totalorder %s23, 2
      %p83 = por %p81, %p82
      %p84 = scmp.ne.s32.totalorder %s75, %s76
      %p85 = scmp.eq.s32.totalorder %s23, 0
      %p86 = por %p84, %p85
      %p87 = scmp.ne.s32.totalorder %s75, %s76
      %p88 = scmp.eq.s32.totalorder %s24, 2
      %p89 = por %p87, %p88
      %p91 = scmp.ne.s32.totalorder %s76, %s90
      %p92 = scmp.eq.s32.totalorder %s24, 0
      %p93 = por %p91, %p92
      %s95 = sadd.s32 %s94, 1
      %p98 = scmp.eq.s32.totalorder %s18, 2
      %p99 = scmp.ne.s32.totalorder %s94, %s96
      %p100 = scmp.eq.s32.totalorder %s18, 0
      %p101 = por %p99, %p100
      %p102 = scmp.ne.s32.totalorder %s94, %s96
      %p103 = scmp.eq.s32.totalorder %s23, 2
      %p104 = por %p102, %p103
      %p105 = scmp.ne.s32.totalorder %s96, %s97
      %p106 = scmp.eq.s32.totalorder %s23, 0
      %p107 = por %p105, %p106
      %p108 = scmp.ne.s32.totalorder %s96, %s97
      %p109 = scmp.eq.s32.totalorder %s24, 2
      %p110 = por %p108, %p109
      %p112 = scmp.ne.s32.totalorder %s97, %s111
      %p113 = scmp.eq.s32.totalorder %s24, 0
      %p114 = por %p112, %p113
      %s116 = sadd.s32 %s115, 1
      %p119 = scmp.eq.s32.totalorder %s18, 2
      %p120 = scmp.ne.s32.totalorder %s115, %s117
      %p121 = scmp.eq.s32.totalorder %s18, 0
      %p122 = por %p120, %p121
      %p123 = scmp.ne.s32.totalorder %s115, %s117
      %p124 = scmp.eq.s32.totalorder %s23, 2
      %p125 = por %p123, %p124
      %p126 = scmp.ne.s32.totalorder %s117, %s118
      %p127 = scmp.eq.s32.totalorder %s23, 0
      %p128 = por %p126, %p127
      %p129 = scmp.ne.s32.totalorder %s117, %s118
      %p130 = scmp.eq.s32.totalorder %s24, 2
      %p131 = por %p129, %p130
      %p133 = scmp.ne.s32.totalorder %s118, %s132
      %p134 = scmp.eq.s32.totalorder %s24, 0
      %p135 = por %p133, %p134
      %s137 = sadd.s32 %s136, 1
      %p140 = scmp.eq.s32.totalorder %s18, 2
      %p141 = scmp.ne.s32.totalorder %s136, %s138
      %p142 = scmp.eq.s32.totalorder %s18, 0
      %p143 = por %p141, %p142
      %p144 = scmp.ne.s32.totalorder %s136, %s138
      %p145 = scmp.eq.s32.totalorder %s23, 2
      %p146 = por %p144, %p145
      %p147 = scmp.ne.s32.totalorder %s138, %s139
      %p148 = scmp.eq.s32.totalorder %s23, 0
      %p149 = por %p147, %p148
      %p150 = scmp.ne.s32.totalorder %s138, %s139
      %p151 = scmp.eq.s32.totalorder %s24, 2
      %p152 = por %p150, %p151
      %p154 = scmp.ne.s32.totalorder %s139, %s153
      %p155 = scmp.eq.s32.totalorder %s24, 0
      %p156 = por %p154, %p155
      %s158 = sadd.s32 %s157, 1
      %p161 = scmp.eq.s32.totalorder %s18, 2
      %p162 = scmp.ne.s32.totalorder %s157, %s159
      %p163 = scmp.eq.s32.totalorder %s18, 0
      %p164 = por %p162, %p163
      %p165 = scmp.ne.s32.totalorder %s157, %s159
      %p166 = scmp.eq.s32.totalorder %s23, 2
      %p167 = por %p165, %p166
      %p168 = scmp.ne.s32.totalorder %s159, %s160
      %p169 = scmp.eq.s32.totalorder %s23, 0
      %p170 = por %p168, %p169
      %p171 = scmp.ne.s32.totalorder %s159, %s160
      %p172 = scmp.eq.s32.totalorder %s24, 2
      %p173 = por %p171, %p172
      %p175 = scmp.ne.s32.totalorder %s160, %s174
      %p176 = scmp.eq.s32.totalorder %s24, 0
      %p177 = por %p175, %p176
      %s179 = sadd.s32 %s178, 1
      %p182 = scmp.eq.s32.totalorder %s18, 2
      %p183 = scmp.ne.s32.totalorder %s178, %s180
      %p184 = scmp.eq.s32.totalorder %s18, 0
      %p185 = por %p183, %p184
      %p186 = scmp.ne.s32.totalorder %s178, %s180
      %p187 = scmp.eq.s32.totalorder %s23, 2
      %p188 = por %p186, %p187
      %p189 = scmp.ne.s32.totalorder %s180, %s181
      %p190 = scmp.eq.s32.totalorder %s23, 0
      %p191 = por %p189, %p190
      %p192 = scmp.ne.s32.totalorder %s180, %s181
      %p193 = scmp.eq.s32.totalorder %s24, 2
      %p194 = por %p192, %p193
      %p196 = scmp.ne.s32.totalorder %s181, %s195
      %p197 = scmp.eq.s32.totalorder %s24, 0
      %p198 = por %p196, %p197
      %p199 = scmp.le.s32.totalorder 1, %s18
      %p200 = scmp.lt.s32.totalorder %s18, 4
      %p201 = pnand %p199, %p200
      %p202 = pneg %p201
      // Predicated region
      $region9: #{memory_meta_learner_forward.1} parent=5 // pred_check
        _
      $region10: #{memory_meta_learner_forward.1} parent=5 // pred_check_branch
        %204 = sbr.rel (%p201) target = $region12
      $region11: #{memory_meta_learner_forward.1} parent=5 // pred_region
        %s205 = ssub.s32 %s18, 1
        // Predicated region
        $region13: #{memory_meta_learner_forward.1} parent=11 // pred_check
          %p206 = pneg %p65
        $region14: #{memory_meta_learner_forward.1} parent=11 // pred_check_branch
          %208 = sbr.rel (%p206) target = $region16
        $region15: #{memory_meta_learner_forward.1} parent=11 // pred_region
          %s210 = ssub.s32 4096, 4096
          %211 = vsyncadd [#allocation8], %s210
          %s212 = sshll.u32 [#allocation7], 4
          %s213 = int_to_ptr.vmem [resolvable:$true] %s212
          %218 = dma.hbm_to_vmem [thread:$0]  %s1, 4096, %s213, [#allocation8], 128, 128, 8
        $region16: #{memory_meta_learner_forward.1} parent=11 // pred_fallthru
          _
        // Predicated region
        $region17: #{memory_meta_learner_forward.1} parent=11 // pred_check
          %p219 = pneg %p86
        $region18: #{memory_meta_learner_forward.1} parent=11 // pred_check_branch
          %221 = sbr.rel (%p219) target = $region20
        $region19: #{memory_meta_learner_forward.1} parent=11 // pred_region
          _
        $region20: #{memory_meta_learner_forward.1} parent=11 // pred_fallthru
          _
        // Predicated region
        $region21: #{memory_meta_learner_forward.1} parent=11 // pred_check
          %p222 = pneg %p107
        $region22: #{memory_meta_learner_forward.1} parent=11 // pred_check_branch
          %224 = sbr.rel (%p222) target = $region24
        $region23: #{memory_meta_learner_forward.1} parent=11 // pred_region
          %s226 = ssub.s32 4096, 4096
          %227 = vsyncadd [#allocation8], %s226
          %s228 = sshll.u32 [#allocation9], 4
          %s229 = int_to_ptr.vmem [resolvable:$true] %s228
          %234 = dma.hbm_to_vmem [thread:$0]  %s3, 4096, %s229, [#allocation8], 256, 256, 16
        $region24: #{memory_meta_learner_forward.1} parent=11 // pred_fallthru
          _
        // Predicated region
        $region25: #{memory_meta_learner_forward.1} parent=11 // pred_check
          %p235 = pneg %p128
        $region26: #{memory_meta_learner_forward.1} parent=11 // pred_check_branch
          %237 = sbr.rel (%p235) target = $region28
        $region27: #{memory_meta_learner_forward.1} parent=11 // pred_region
          _
        $region28: #{memory_meta_learner_forward.1} parent=11 // pred_fallthru
          _
        // Predicated region
        $region29: #{memory_meta_learner_forward.1} parent=11 // pred_check
          %p238 = pneg %p149
        $region30: #{memory_meta_learner_forward.1} parent=11 // pred_check_branch
          %240 = sbr.rel (%p238) target = $region32
        $region31: #{memory_meta_learner_forward.1} parent=11 // pred_region
          _
        $region32: #{memory_meta_learner_forward.1} parent=11 // pred_fallthru
          _
        // Predicated region
        $region33: #{memory_meta_learner_forward.1} parent=11 // pred_check
          %p241 = pneg %p170
        $region34: #{memory_meta_learner_forward.1} parent=11 // pred_check_branch
          %243 = sbr.rel (%p241) target = $region36
        $region35: #{memory_meta_learner_forward.1} parent=11 // pred_region
          _
        $region36: #{memory_meta_learner_forward.1} parent=11 // pred_fallthru
          _
      $region12: #{memory_meta_learner_forward.1} parent=5 // pred_fallthru
        _
      %p244 = scmp.lt.s32.totalorder %s18, 3
      // Predicated region
      $region37: #{memory_meta_learner_forward.1} parent=5 // pred_check
        %p245 = pneg %p244
      $region38: #{memory_meta_learner_forward.1} parent=5 // pred_check_branch
        %247 = sbr.rel (%p245) target = $region40
      $region39: #{memory_meta_learner_forward.1} parent=5 // pred_region
        // Predicated region
        $region41: #{memory_meta_learner_forward.1} parent=39 // pred_check
          %p248 = pneg %p38
        $region42: #{memory_meta_learner_forward.1} parent=39 // pred_check_branch
          %250 = sbr.rel (%p248) target = $region44
        $region43: #{memory_meta_learner_forward.1} parent=39 // pred_region
          %s251 = sand.u32 %s28, 1
          %s252 = scalar_lea.sflag [#allocation5], %s251
          %s253 = sand.u32 %s28, 1
          %s254 = smul.addr %s253, 16
          %s255 = scalar_lea.vmem [#allocation4], %s254
          %s257 = ssub.s32 256, 256
          %258 = vsyncadd %s252, %s257
          %s259 = smul.addr %s18, 2
          %s260 = smul.addr %s259, 128
          %s261 = scalar_lea.hbm %s0, %s260
          %s263 = sshll.u32 %s255, 4
          %s264 = int_to_ptr.vmem [resolvable:$true] %s263
          %266 = dma.hbm_to_vmem [thread:$0]  %s261, 256, %s264, %s252
        $region44: #{memory_meta_learner_forward.1} parent=39 // pred_fallthru
          _
      $region40: #{memory_meta_learner_forward.1} parent=5 // pred_fallthru
        _
      %p267 = scmp.le.s32.totalorder 1, %s18
      %p268 = scmp.lt.s32.totalorder %s18, 4
      %p269 = pnand %p267, %p268
      %p270 = pneg %p269
      // Predicated region
      $region45: #{memory_meta_learner_forward.1} parent=5 // pred_check
        _
      $region46: #{memory_meta_learner_forward.1} parent=5 // pred_check_branch
        %272 = sbr.rel (%p269) target = $region48
      $region47: #{memory_meta_learner_forward.1} parent=5 // pred_region
        %s273 = ssub.s32 %s18, 1
        %s274 = sand.u32 %s31, 1
        %s275 = scalar_lea.sflag [#allocation5], %s274
        %s276 = sand.u32 %s31, 1
        %s277 = smul.addr %s276, 16
        %s278 = scalar_lea.vmem [#allocation4], %s277
        // Predicated region
        $region49: #{memory_meta_learner_forward.1} parent=47 // pred_check
          %p279 = pneg %p44
        $region50: #{memory_meta_learner_forward.1} parent=47 // pred_check_branch
          %281 = sbr.rel (%p279) target = $region52
        $region51: #{memory_meta_learner_forward.1} parent=47 // pred_region
          %282 = dma.done %s275, 256
        $region52: #{memory_meta_learner_forward.1} parent=47 // pred_fallthru
          _
        // Predicated region
        $region53: #{memory_meta_learner_forward.1} parent=47 // pred_check
          %p283 = pneg %p65
        $region54: #{memory_meta_learner_forward.1} parent=47 // pred_check_branch
          %285 = sbr.rel (%p283) target = $region56
        $region55: #{memory_meta_learner_forward.1} parent=47 // pred_region
          %286 = dma.done [#allocation8], 4096
        $region56: #{memory_meta_learner_forward.1} parent=47 // pred_fallthru
          _
        // Predicated region
        $region57: #{memory_meta_learner_forward.1} parent=47 // pred_check
          %p287 = pneg %p107
        $region58: #{memory_meta_learner_forward.1} parent=47 // pred_check_branch
          %289 = sbr.rel (%p287) target = $region60
        $region59: #{memory_meta_learner_forward.1} parent=47 // pred_region
          %290 = dma.done [#allocation8], 4096
        $region60: #{memory_meta_learner_forward.1} parent=47 // pred_fallthru
          _
        %s291 = sand.u32 %s31, 1
        %s292 = scalar_lea.sflag [#allocation5], %s291
        %s293 = sand.u32 %s31, 1
        %s294 = smul.addr %s293, 16
        %s295 = scalar_lea.vmem [#allocation4], %s294
        %p296 = pneg %p44
        %p297 = pneg %p41
        %p298 = pneg %p65
        %p299 = pneg %p62
        %p300 = pneg %p86
        %p301 = pneg %p83
        %p302 = pneg %p107
        %p303 = pneg %p104
        %p304 = pneg %p128
        %p305 = pneg %p125
        %p306 = pneg %p149
        %p307 = pneg %p146
        %p308 = pneg %p170
        %p309 = pneg %p167
        %p310 = pneg %p191
        %p311 = pneg %p188
        %p312 = scmp.eq.s32.totalorder %s23, 0
        // Predicated region
        $region61: #{memory_meta_learner_forward.1} parent=47 // pred_check
          %p313 = pneg %p312
        $region62: #{memory_meta_learner_forward.1} parent=47 // pred_check_branch
          %315 = sbr.rel (%p313) target = $region64
        $region63: #{memory_meta_learner_forward.1} parent=47 // pred_region
          %v316 = vld [vmem:[#allocation9] sm:$0xff]
          %v317 = vld [vmem:[#allocation9 + $0x8] sm:$0xff]
          %v318 = vld [vmem:[#allocation9 + $0x10] sm:$0xff]
          %v319 = vld [vmem:[#allocation9 + $0x18] sm:$0xff]
          %v320 = vld [vmem:[#allocation9 + $0x20] sm:$0xff]
          %v321 = vld [vmem:[#allocation9 + $0x28] sm:$0xff]
          %v322 = vld [vmem:[#allocation9 + $0x30] sm:$0xff]
          %v323 = vld [vmem:[#allocation9 + $0x38] sm:$0xff]
          %v324 = vld [vmem:[#allocation9 + $0x40] sm:$0xff]
          %v325 = vld [vmem:[#allocation9 + $0x48] sm:$0xff]
          %v326 = vld [vmem:[#allocation9 + $0x50] sm:$0xff]
          %v327 = vld [vmem:[#allocation9 + $0x58] sm:$0xff]
          %v328 = vld [vmem:[#allocation9 + $0x60] sm:$0xff]
          %v329 = vld [vmem:[#allocation9 + $0x68] sm:$0xff]
          %v330 = vld [vmem:[#allocation9 + $0x70] sm:$0xff]
          %v331 = vld [vmem:[#allocation9 + $0x78] sm:$0xff]
          %v332 = vld [vmem:[#allocation9 + $0x80] sm:$0xff]
          %v333 = vld [vmem:[#allocation9 + $0x88] sm:$0xff]
          %v334 = vld [vmem:[#allocation9 + $0x90] sm:$0xff]
          %v335 = vld [vmem:[#allocation9 + $0x98] sm:$0xff]
          %v336 = vld [vmem:[#allocation9 + $0xa0] sm:$0xff]
          %v337 = vld [vmem:[#allocation9 + $0xa8] sm:$0xff]
          %v338 = vld [vmem:[#allocation9 + $0xb0] sm:$0xff]
          %v339 = vld [vmem:[#allocation9 + $0xb8] sm:$0xff]
          %v340 = vld [vmem:[#allocation9 + $0xc0] sm:$0xff]
          %v341 = vld [vmem:[#allocation9 + $0xc8] sm:$0xff]
          %v342 = vld [vmem:[#allocation9 + $0xd0] sm:$0xff]
          %v343 = vld [vmem:[#allocation9 + $0xd8] sm:$0xff]
          %v344 = vld [vmem:[#allocation9 + $0xe0] sm:$0xff]
          %v345 = vld [vmem:[#allocation9 + $0xe8] sm:$0xff]
          %v346 = vld [vmem:[#allocation9 + $0xf0] sm:$0xff]
          %v347 = vld [vmem:[#allocation9 + $0xf8] sm:$0xff]
          %348 = vst [vmem:[#allocation2] sm:$0xff] %v316
          %349 = vst [vmem:[#allocation2 + $0x8] sm:$0xff] %v317
          %350 = vst [vmem:[#allocation2 + $0x10] sm:$0xff] %v318
          %351 = vst [vmem:[#allocation2 + $0x18] sm:$0xff] %v319
          %352 = vst [vmem:[#allocation2 + $0x20] sm:$0xff] %v320
          %353 = vst [vmem:[#allocation2 + $0x28] sm:$0xff] %v321
          %354 = vst [vmem:[#allocation2 + $0x30] sm:$0xff] %v322
          %355 = vst [vmem:[#allocation2 + $0x38] sm:$0xff] %v323
          %356 = vst [vmem:[#allocation2 + $0x40] sm:$0xff] %v324
          %357 = vst [vmem:[#allocation2 + $0x48] sm:$0xff] %v325
          %358 = vst [vmem:[#allocation2 + $0x50] sm:$0xff] %v326
          %359 = vst [vmem:[#allocation2 + $0x58] sm:$0xff] %v327
          %360 = vst [vmem:[#allocation2 + $0x60] sm:$0xff] %v328
          %361 = vst [vmem:[#allocation2 + $0x68] sm:$0xff] %v329
          %362 = vst [vmem:[#allocation2 + $0x70] sm:$0xff] %v330
          %363 = vst [vmem:[#allocation2 + $0x78] sm:$0xff] %v331
          %364 = vst [vmem:[#allocation2 + $0x80] sm:$0xff] %v332
          %365 = vst [vmem:[#allocation2 + $0x88] sm:$0xff] %v333
          %366 = vst [vmem:[#allocation2 + $0x90] sm:$0xff] %v334
          %367 = vst [vmem:[#allocation2 + $0x98] sm:$0xff] %v335
          %368 = vst [vmem:[#allocation2 + $0xa0] sm:$0xff] %v336
          %369 = vst [vmem:[#allocation2 + $0xa8] sm:$0xff] %v337
          %370 = vst [vmem:[#allocation2 + $0xb0] sm:$0xff] %v338
          %371 = vst [vmem:[#allocation2 + $0xb8] sm:$0xff] %v339
          %372 = vst [vmem:[#allocation2 + $0xc0] sm:$0xff] %v340
          %373 = vst [vmem:[#allocation2 + $0xc8] sm:$0xff] %v341
          %374 = vst [vmem:[#allocation2 + $0xd0] sm:$0xff] %v342
          %375 = vst [vmem:[#allocation2 + $0xd8] sm:$0xff] %v343
          %376 = vst [vmem:[#allocation2 + $0xe0] sm:$0xff] %v344
          %377 = vst [vmem:[#allocation2 + $0xe8] sm:$0xff] %v345
          %378 = vst [vmem:[#allocation2 + $0xf0] sm:$0xff] %v346
          %379 = vst [vmem:[#allocation2 + $0xf8] sm:$0xff] %v347
          %v380 = vld [vmem:[%s4] sm:$0x3]
          %v381 = vlaneseq
          %vm382 = vcmp.ge.s32.totalorder %v381, 0
          %vm383 = vcmp.lt.s32.totalorder %v381, 256
          %vm384 = vmand %vm382, %vm383
          %385 = vst.msk [vmem:[#allocation3] sm:$0x3] %vm384, %v380
        $region64: #{memory_meta_learner_forward.1} parent=47 // pred_fallthru
          _
        %v386 = vld [vmem:[#allocation7] sm:$0xff]
        %v387 = vld [vmem:[#allocation7 + $0x8] sm:$0xff]
        %v388 = vld [vmem:[#allocation7 + $0x10] sm:$0xff]
        %v389 = vld [vmem:[#allocation7 + $0x18] sm:$0xff]
        %v390 = vld [vmem:[#allocation7 + $0x20] sm:$0xff]
        %v391 = vld [vmem:[#allocation7 + $0x28] sm:$0xff]
        %v392 = vld [vmem:[#allocation7 + $0x30] sm:$0xff]
        %v393 = vld [vmem:[#allocation7 + $0x38] sm:$0xff]
        %v394 = vld [vmem:[#allocation7 + $0x40] sm:$0xff]
        %v395 = vld [vmem:[#allocation7 + $0x48] sm:$0xff]
        %v396 = vld [vmem:[#allocation7 + $0x50] sm:$0xff]
        %v397 = vld [vmem:[#allocation7 + $0x58] sm:$0xff]
        %v398 = vld [vmem:[#allocation7 + $0x60] sm:$0xff]
        %v399 = vld [vmem:[#allocation7 + $0x68] sm:$0xff]
        %v400 = vld [vmem:[#allocation7 + $0x70] sm:$0xff]
        %v401 = vld [vmem:[#allocation7 + $0x78] sm:$0xff]
        %v402 = vld [vmem:[#allocation7 + $0x80] sm:$0xff]
        %v403 = vld [vmem:[#allocation7 + $0x88] sm:$0xff]
        %v404 = vld [vmem:[#allocation7 + $0x90] sm:$0xff]
        %v405 = vld [vmem:[#allocation7 + $0x98] sm:$0xff]
        %v406 = vld [vmem:[#allocation7 + $0xa0] sm:$0xff]
        %v407 = vld [vmem:[#allocation7 + $0xa8] sm:$0xff]
        %v408 = vld [vmem:[#allocation7 + $0xb0] sm:$0xff]
        %v409 = vld [vmem:[#allocation7 + $0xb8] sm:$0xff]
        %v410 = vld [vmem:[#allocation7 + $0xc0] sm:$0xff]
        %v411 = vld [vmem:[#allocation7 + $0xc8] sm:$0xff]
        %v412 = vld [vmem:[#allocation7 + $0xd0] sm:$0xff]
        %v413 = vld [vmem:[#allocation7 + $0xd8] sm:$0xff]
        %v414 = vld [vmem:[#allocation7 + $0xe0] sm:$0xff]
        %v415 = vld [vmem:[#allocation7 + $0xe8] sm:$0xff]
        %v416 = vld [vmem:[#allocation7 + $0xf0] sm:$0xff]
        %v417 = vld [vmem:[#allocation7 + $0xf8] sm:$0xff]
        %v418 = vld [vmem:[%s2] sm:$0x1]
        %v419 = vld [vmem:[%s278] sm:$0xff]
        %v420 = vld [vmem:[%s278 + $0x8] sm:$0xff]
        %v422 = vlaneseq
        %v423 = vshrl.u32 %v422, 7
        %v424 = vsub.s32 0, %v423
        %v425 = vrot.slane %v418, %v424
        %427 = vmatprep.subr.mxu0 0.0
        %428 = vmatpush1.msra.mxu0 %v386
        %429 = vmatprep.subr.mxu0 0.0
        %430 = vmatpush1.msra.mxu0 %v387
        %431 = vmatprep.subr.mxu0 0.0
        %432 = vmatpush1.msra.mxu0 %v388
        %433 = vmatprep.subr.mxu0 0.0
        %434 = vmatpush1.msra.mxu0 %v389
        %435 = vmatprep.subr.mxu0 0.0
        %436 = vmatpush1.msra.mxu0 %v390
        %437 = vmatprep.subr.mxu0 0.0
        %438 = vmatpush1.msra.mxu0 %v391
        %439 = vmatprep.subr.mxu0 0.0
        %440 = vmatpush1.msra.mxu0 %v392
        %441 = vmatprep.subr.mxu0 0.0
        %442 = vmatpush1.msra.mxu0 %v393
        %443 = vmatprep.subr.mxu0 0.0
        %444 = vmatpush1.msra.mxu0 %v394
        %445 = vmatprep.subr.mxu0 0.0
        %446 = vmatpush1.msra.mxu0 %v395
        %447 = vmatprep.subr.mxu0 0.0
        %448 = vmatpush1.msra.mxu0 %v396
        %449 = vmatprep.subr.mxu0 0.0
        %450 = vmatpush1.msra.mxu0 %v397
        %451 = vmatprep.subr.mxu0 0.0
        %452 = vmatpush1.msra.mxu0 %v398
        %453 = vmatprep.subr.mxu0 0.0
        %454 = vmatpush1.msra.mxu0 %v399
        %455 = vmatprep.subr.mxu0 0.0
        %456 = vmatpush1.msra.mxu0 %v400
        %457 = vmatprep.subr.mxu0 0.0
        %458 = vmatpush1.msra.mxu0 %v401
        %459 = vmatprep.subr.mxu0 0.0
        %460 = vmatpush1.msra.mxu0 %v402
        %461 = vmatprep.subr.mxu0 0.0
        %462 = vmatpush1.msra.mxu0 %v403
        %463 = vmatprep.subr.mxu0 0.0
        %464 = vmatpush1.msra.mxu0 %v404
        %465 = vmatprep.subr.mxu0 0.0
        %466 = vmatpush1.msra.mxu0 %v405
        %467 = vmatprep.subr.mxu0 0.0
        %468 = vmatpush1.msra.mxu0 %v406
        %469 = vmatprep.subr.mxu0 0.0
        %470 = vmatpush1.msra.mxu0 %v407
        %471 = vmatprep.subr.mxu0 0.0
        %472 = vmatpush1.msra.mxu0 %v408
        %473 = vmatprep.subr.mxu0 0.0
        %474 = vmatpush1.msra.mxu0 %v409
        %475 = vmatprep.subr.mxu0 0.0
        %476 = vmatpush1.msra.mxu0 %v410
        %477 = vmatprep.subr.mxu0 0.0
        %478 = vmatpush1.msra.mxu0 %v411
        %479 = vmatprep.subr.mxu0 0.0
        %480 = vmatpush1.msra.mxu0 %v412
        %481 = vmatprep.subr.mxu0 0.0
        %482 = vmatpush1.msra.mxu0 %v413
        %483 = vmatprep.subr.mxu0 0.0
        %484 = vmatpush1.msra.mxu0 %v414
        %485 = vmatprep.subr.mxu0 0.0
        %486 = vmatpush1.msra.mxu0 %v415
        %487 = vmatprep.subr.mxu0 0.0
        %488 = vmatpush1.msra.mxu0 %v416
        %489 = vmatprep.subr.mxu0 0.0
        %490 = vmatpush1.msra.mxu0 %v417
        %491 = vmatprep.mubr.f32.mxu0 %v420
        %492 = vmatmul.mubr.f32.gmra.mrb[0].mxu0 %v419
        %v493 = vpop.f32.mrb[0].mxu0
        %v494 = vadd.f32 %v425, %v493
        %v495 = vpop.f32.mrb[0].mxu0
        %496 = vdwg.mxu0
        %v497 = vmax.f32 %v494, 0.0
        %v498 = vld [vmem:[#allocation2] sm:$0xff]
        %v499 = vld [vmem:[#allocation2 + $0x8] sm:$0xff]
        %v500 = vld [vmem:[#allocation2 + $0x10] sm:$0xff]
        %v501 = vld [vmem:[#allocation2 + $0x18] sm:$0xff]
        %v502 = vld [vmem:[#allocation2 + $0x20] sm:$0xff]
        %v503 = vld [vmem:[#allocation2 + $0x28] sm:$0xff]
        %v504 = vld [vmem:[#allocation2 + $0x30] sm:$0xff]
        %v505 = vld [vmem:[#allocation2 + $0x38] sm:$0xff]
        %v506 = vld [vmem:[#allocation2 + $0x40] sm:$0xff]
        %v507 = vld [vmem:[#allocation2 + $0x48] sm:$0xff]
        %v508 = vld [vmem:[#allocation2 + $0x50] sm:$0xff]
        %v509 = vld [vmem:[#allocation2 + $0x58] sm:$0xff]
        %v510 = vld [vmem:[#allocation2 + $0x60] sm:$0xff]
        %v511 = vld [vmem:[#allocation2 + $0x68] sm:$0xff]
        %v512 = vld [vmem:[#allocation2 + $0x70] sm:$0xff]
        %v513 = vld [vmem:[#allocation2 + $0x78] sm:$0xff]
        %v514 = vld [vmem:[#allocation2 + $0x80] sm:$0xff]
        %v515 = vld [vmem:[#allocation2 + $0x88] sm:$0xff]
        %v516 = vld [vmem:[#allocation2 + $0x90] sm:$0xff]
        %v517 = vld [vmem:[#allocation2 + $0x98] sm:$0xff]
        %v518 = vld [vmem:[#allocation2 + $0xa0] sm:$0xff]
        %v519 = vld [vmem:[#allocation2 + $0xa8] sm:$0xff]
        %v520 = vld [vmem:[#allocation2 + $0xb0] sm:$0xff]
        %v521 = vld [vmem:[#allocation2 + $0xb8] sm:$0xff]
        %v522 = vld [vmem:[#allocation2 + $0xc0] sm:$0xff]
        %v523 = vld [vmem:[#allocation2 + $0xc8] sm:$0xff]
        %v524 = vld [vmem:[#allocation2 + $0xd0] sm:$0xff]
        %v525 = vld [vmem:[#allocation2 + $0xd8] sm:$0xff]
        %v526 = vld [vmem:[#allocation2 + $0xe0] sm:$0xff]
        %v527 = vld [vmem:[#allocation2 + $0xe8] sm:$0xff]
        %v528 = vld [vmem:[#allocation2 + $0xf0] sm:$0xff]
        %v529 = vld [vmem:[#allocation2 + $0xf8] sm:$0xff]
        %v530 = vld [vmem:[#allocation3] sm:$0x3]
        %v532 = vlaneseq
        %v533 = vshrl.u32 %v532, 7
        %v534 = vsub.s32 0, %v533
        %v535 = vrot.slane %v530, %v534
        %v536 = vlaneseq
        %v537 = vshrl.u32 %v536, 7
        %v538 = vsub.s32 1, %v537
        %v539 = vrot.slane %v530, %v538
        %542 = vmatprep.subr.mxu0 %v499
        %543 = vmatpush1.msra.mxu0 %v498
        %544 = vmatprep.subr.mxu0 %v501
        %545 = vmatpush1.msra.mxu0 %v500
        %546 = vmatprep.subr.mxu0 %v503
        %547 = vmatpush1.msra.mxu0 %v502
        %548 = vmatprep.subr.mxu0 %v505
        %549 = vmatpush1.msra.mxu0 %v504
        %550 = vmatprep.subr.mxu0 %v507
        %551 = vmatpush1.msra.mxu0 %v506
        %552 = vmatprep.subr.mxu0 %v509
        %553 = vmatpush1.msra.mxu0 %v508
        %554 = vmatprep.subr.mxu0 %v511
        %555 = vmatpush1.msra.mxu0 %v510
        %556 = vmatprep.subr.mxu0 %v513
        %557 = vmatpush1.msra.mxu0 %v512
        %558 = vmatprep.subr.mxu0 %v515
        %559 = vmatpush1.msra.mxu0 %v514
        %560 = vmatprep.subr.mxu0 %v517
        %561 = vmatpush1.msra.mxu0 %v516
        %562 = vmatprep.subr.mxu0 %v519
        %563 = vmatpush1.msra.mxu0 %v518
        %564 = vmatprep.subr.mxu0 %v521
        %565 = vmatpush1.msra.mxu0 %v520
        %566 = vmatprep.subr.mxu0 %v523
        %567 = vmatpush1.msra.mxu0 %v522
        %568 = vmatprep.subr.mxu0 %v525
        %569 = vmatpush1.msra.mxu0 %v524
        %570 = vmatprep.subr.mxu0 %v527
        %571 = vmatpush1.msra.mxu0 %v526
        %572 = vmatprep.subr.mxu0 %v529
        %573 = vmatpush1.msra.mxu0 %v528
        %574 = vmatprep.subr.mxu0 0.0
        %575 = vmatpush1.msra.mxu0 0.0
        %576 = vmatprep.subr.mxu0 0.0
        %577 = vmatpush1.msra.mxu0 0.0
        %578 = vmatprep.subr.mxu0 0.0
        %579 = vmatpush1.msra.mxu0 0.0
        %580 = vmatprep.subr.mxu0 0.0
        %581 = vmatpush1.msra.mxu0 0.0
        %582 = vmatprep.subr.mxu0 0.0
        %583 = vmatpush1.msra.mxu0 0.0
        %584 = vmatprep.subr.mxu0 0.0
        %585 = vmatpush1.msra.mxu0 0.0
        %586 = vmatprep.subr.mxu0 0.0
        %587 = vmatpush1.msra.mxu0 0.0
        %588 = vmatprep.subr.mxu0 0.0
        %589 = vmatpush1.msra.mxu0 0.0
        %590 = vmatprep.subr.mxu0 0.0
        %591 = vmatpush1.msra.mxu0 0.0
        %592 = vmatprep.subr.mxu0 0.0
        %593 = vmatpush1.msra.mxu0 0.0
        %594 = vmatprep.subr.mxu0 0.0
        %595 = vmatpush1.msra.mxu0 0.0
        %596 = vmatprep.subr.mxu0 0.0
        %597 = vmatpush1.msra.mxu0 0.0
        %598 = vmatprep.subr.mxu0 0.0
        %599 = vmatpush1.msra.mxu0 0.0
        %600 = vmatprep.subr.mxu0 0.0
        %601 = vmatpush1.msra.mxu0 0.0
        %602 = vmatprep.subr.mxu0 0.0
        %603 = vmatpush1.msra.mxu0 0.0
        %604 = vmatprep.subr.mxu0 0.0
        %605 = vmatpush1.msra.mxu0 0.0
        %606 = vmatprep.mubr.f32.mxu0 0.0
        %607 = vmatmul.mubr.f32.gmra.mrb[0].mxu0 %v497
        %v608 = vpop.f32.mrb[0].mxu0
        %v609 = vadd.f32 %v535, %v608
        %v610 = vpop.f32.mrb[0].mxu0
        %v611 = vadd.f32 %v539, %v610
        %612 = vdwg.mxu0
        %v613 = vsub.f32 %v609, %v419
        %v614 = vsub.f32 %v611, %v420
        %v615 = vmul.f32 %v613, 0.0009765625
        %v616 = vmul.f32 %v614, 0.0009765625
        %617 = vxpose.xlu0.b32.start [1/16] %v497, 128
        %618 = vxpose.xlu0.b32.cont [2/16] 0.0, 128
        %619 = vxpose.xlu0.b32.cont [3/16] 0.0, 128
        %620 = vxpose.xlu0.b32.cont [4/16] 0.0, 128
        %621 = vxpose.xlu0.b32.cont [5/16] 0.0, 128
        %622 = vxpose.xlu0.b32.cont [6/16] 0.0, 128
        %623 = vxpose.xlu0.b32.cont [7/16] 0.0, 128
        %624 = vxpose.xlu0.b32.cont [8/16] 0.0, 128
        %625 = vxpose.xlu0.b32.cont [9/16] 0.0, 128
        %626 = vxpose.xlu0.b32.cont [10/16] 0.0, 128
        %627 = vxpose.xlu0.b32.cont [11/16] 0.0, 128
        %628 = vxpose.xlu0.b32.cont [12/16] 0.0, 128
        %629 = vxpose.xlu0.b32.cont [13/16] 0.0, 128
        %630 = vxpose.xlu0.b32.cont [14/16] 0.0, 128
        %631 = vxpose.xlu0.b32.cont [15/16] 0.0, 128
        %632 = vxpose.xlu0.b32.end [16/16] 0.0, 128
        %v633 = vpop.trf.xlu0
        %v634 = vpop.trf.xlu0
        %v635 = vpop.trf.xlu0
        %v636 = vpop.trf.xlu0
        %v637 = vpop.trf.xlu0
        %v638 = vpop.trf.xlu0
        %v639 = vpop.trf.xlu0
        %v640 = vpop.trf.xlu0
        %v641 = vpop.trf.xlu0
        %v642 = vpop.trf.xlu0
        %v643 = vpop.trf.xlu0
        %v644 = vpop.trf.xlu0
        %v645 = vpop.trf.xlu0
        %v646 = vpop.trf.xlu0
        %v647 = vpop.trf.xlu0
        %v648 = vpop.trf.xlu0
        %vm649 = vcmask 64512
        %v651 = vsel %vm649, %v633, 0
        %v654 = vsel %vm649, %v634, 0
        %v657 = vsel %vm649, %v635, 0
        %v660 = vsel %vm649, %v636, 0
        %v663 = vsel %vm649, %v637, 0
        %v666 = vsel %vm649, %v638, 0
        %v669 = vsel %vm649, %v639, 0
        %v672 = vsel %vm649, %v640, 0
        %v675 = vsel %vm649, %v641, 0
        %v678 = vsel %vm649, %v642, 0
        %v681 = vsel %vm649, %v643, 0
        %v684 = vsel %vm649, %v644, 0
        %v687 = vsel %vm649, %v645, 0
        %v690 = vsel %vm649, %v646, 0
        %v693 = vsel %vm649, %v647, 0
        %v696 = vsel %vm649, %v648, 0
        %698 = vmatprep.subr.mxu0 %v616
        %699 = vmatpush1.msra.mxu0 %v615
        %700 = vmatprep.subr.mxu0 0.0
        %701 = vmatpush1.msra.mxu0 0.0
        %702 = vmatprep.subr.mxu0 0.0
        %703 = vmatpush1.msra.mxu0 0.0
        %704 = vmatprep.subr.mxu0 0.0
        %705 = vmatpush1.msra.mxu0 0.0
        %706 = vmatprep.subr.mxu0 0.0
        %707 = vmatpush1.msra.mxu0 0.0
        %708 = vmatprep.subr.mxu0 0.0
        %709 = vmatpush1.msra.mxu0 0.0
        %710 = vmatprep.subr.mxu0 0.0
        %711 = vmatpush1.msra.mxu0 0.0
        %712 = vmatprep.subr.mxu0 0.0
        %713 = vmatpush1.msra.mxu0 0.0
        %714 = vmatprep.subr.mxu0 0.0
        %715 = vmatpush1.msra.mxu0 0.0
        %716 = vmatprep.subr.mxu0 0.0
        %717 = vmatpush1.msra.mxu0 0.0
        %718 = vmatprep.subr.mxu0 0.0
        %719 = vmatpush1.msra.mxu0 0.0
        %720 = vmatprep.subr.mxu0 0.0
        %721 = vmatpush1.msra.mxu0 0.0
        %722 = vmatprep.subr.mxu0 0.0
        %723 = vmatpush1.msra.mxu0 0.0
        %724 = vmatprep.subr.mxu0 0.0
        %725 = vmatpush1.msra.mxu0 0.0
        %726 = vmatprep.subr.mxu0 0.0
        %727 = vmatpush1.msra.mxu0 0.0
        %728 = vmatprep.subr.mxu0 0.0
        %729 = vmatpush1.msra.mxu0 0.0
        %730 = vmatprep.subr.mxu0 0.0
        %731 = vmatpush1.msra.mxu0 0.0
        %732 = vmatprep.subr.mxu0 0.0
        %733 = vmatpush1.msra.mxu0 0.0
        %734 = vmatprep.subr.mxu0 0.0
        %735 = vmatpush1.msra.mxu0 0.0
        %736 = vmatprep.subr.mxu0 0.0
        %737 = vmatpush1.msra.mxu0 0.0
        %738 = vmatprep.subr.mxu0 0.0
        %739 = vmatpush1.msra.mxu0 0.0
        %740 = vmatprep.subr.mxu0 0.0
        %741 = vmatpush1.msra.mxu0 0.0
        %742 = vmatprep.subr.mxu0 0.0
        %743 = vmatpush1.msra.mxu0 0.0
        %744 = vmatprep.subr.mxu0 0.0
        %745 = vmatpush1.msra.mxu0 0.0
        %746 = vmatprep.subr.mxu0 0.0
        %747 = vmatpush1.msra.mxu0 0.0
        %748 = vmatprep.subr.mxu0 0.0
        %749 = vmatpush1.msra.mxu0 0.0
        %750 = vmatprep.subr.mxu0 0.0
        %751 = vmatpush1.msra.mxu0 0.0
        %752 = vmatprep.subr.mxu0 0.0
        %753 = vmatpush1.msra.mxu0 0.0
        %754 = vmatprep.subr.mxu0 0.0
        %755 = vmatpush1.msra.mxu0 0.0
        %756 = vmatprep.subr.mxu0 0.0
        %757 = vmatpush1.msra.mxu0 0.0
        %758 = vmatprep.subr.mxu0 0.0
        %759 = vmatpush1.msra.mxu0 0.0
        %760 = vmatprep.subr.mxu0 0.0
        %761 = vmatpush1.msra.mxu0 0.0
        %762 = vmatprep.mubr.f32.mxu0 0.0
        %763 = vmatmul.mubr.f32.gmra.mrb[0].mxu0 %v651
        %v764 = vpop.f32.mrb[0].mxu0
        %v765 = vadd.f32 0.0, %v764
        %v766 = vpop.f32.mrb[0].mxu0
        %v767 = vadd.f32 0.0, %v766
        %768 = vmatprep.mubr.f32.mxu0 0.0
        %769 = vmatmul.mubr.f32.gmra.mrb[0].mxu0 %v654
        %v770 = vpop.f32.mrb[0].mxu0
        %v771 = vadd.f32 0.0, %v770
        %v772 = vpop.f32.mrb[0].mxu0
        %v773 = vadd.f32 0.0, %v772
        %774 = vmatprep.mubr.f32.mxu0 0.0
        %775 = vmatmul.mubr.f32.gmra.mrb[0].mxu0 %v657
        %v776 = vpop.f32.mrb[0].mxu0
        %v777 = vadd.f32 0.0, %v776
        %v778 = vpop.f32.mrb[0].mxu0
        %v779 = vadd.f32 0.0, %v778
        %780 = vmatprep.mubr.f32.mxu0 0.0
        %781 = vmatmul.mubr.f32.gmra.mrb[0].mxu0 %v660
        %v782 = vpop.f32.mrb[0].mxu0
        %v783 = vadd.f32 0.0, %v782
        %v784 = vpop.f32.mrb[0].mxu0
        %v785 = vadd.f32 0.0, %v784
        %786 = vmatprep.mubr.f32.mxu0 0.0
        %787 = vmatmul.mubr.f32.gmra.mrb[0].mxu0 %v663
        %v788 = vpop.f32.mrb[0].mxu0
        %v789 = vadd.f32 0.0, %v788
        %v790 = vpop.f32.mrb[0].mxu0
        %v791 = vadd.f32 0.0, %v790
        %792 = vmatprep.mubr.f32.mxu0 0.0
        %793 = vmatmul.mubr.f32.gmra.mrb[0].mxu0 %v666
        %v794 = vpop.f32.mrb[0].mxu0
        %v795 = vadd.f32 0.0, %v794
        %v796 = vpop.f32.mrb[0].mxu0
        %v797 = vadd.f32 0.0, %v796
        %798 = vmatprep.mubr.f32.mxu0 0.0
        %799 = vmatmul.mubr.f32.gmra.mrb[0].mxu0 %v669
        %v800 = vpop.f32.mrb[0].mxu0
        %v801 = vadd.f32 0.0, %v800
        %v802 = vpop.f32.mrb[0].mxu0
        %v803 = vadd.f32 0.0, %v802
        %804 = vmatprep.mubr.f32.mxu0 0.0
        %805 = vmatmul.mubr.f32.gmra.mrb[0].mxu0 %v672
        %v806 = vpop.f32.mrb[0].mxu0
        %v807 = vadd.f32 0.0, %v806
        %v808 = vpop.f32.mrb[0].mxu0
        %v809 = vadd.f32 0.0, %v808
        %810 = vmatprep.mubr.f32.mxu0 0.0
        %811 = vmatmul.mubr.f32.gmra.mrb[0].mxu0 %v675
        %v812 = vpop.f32.mrb[0].mxu0
        %v813 = vadd.f32 0.0, %v812
        %v814 = vpop.f32.mrb[0].mxu0
        %v815 = vadd.f32 0.0, %v814
        %816 = vmatprep.mubr.f32.mxu0 0.0
        %817 = vmatmul.mubr.f32.gmra.mrb[0].mxu0 %v678
        %v818 = vpop.f32.mrb[0].mxu0
        %v819 = vadd.f32 0.0, %v818
        %v820 = vpop.f32.mrb[0].mxu0
        %v821 = vadd.f32 0.0, %v820
        %822 = vmatprep.mubr.f32.mxu0 0.0
        %823 = vmatmul.mubr.f32.gmra.mrb[0].mxu0 %v681
        %v824 = vpop.f32.mrb[0].mxu0
        %v825 = vadd.f32 0.0, %v824
        %v826 = vpop.f32.mrb[0].mxu0
        %v827 = vadd.f32 0.0, %v826
        %828 = vmatprep.mubr.f32.mxu0 0.0
        %829 = vmatmul.mubr.f32.gmra.mrb[0].mxu0 %v684
        %v830 = vpop.f32.mrb[0].mxu0
        %v831 = vadd.f32 0.0, %v830
        %v832 = vpop.f32.mrb[0].mxu0
        %v833 = vadd.f32 0.0, %v832
        %834 = vmatprep.mubr.f32.mxu0 0.0
        %835 = vmatmul.mubr.f32.gmra.mrb[0].mxu0 %v687
        %v836 = vpop.f32.mrb[0].mxu0
        %v837 = vadd.f32 0.0, %v836
        %v838 = vpop.f32.mrb[0].mxu0
        %v839 = vadd.f32 0.0, %v838
        %840 = vmatprep.mubr.f32.mxu0 0.0
        %841 = vmatmul.mubr.f32.gmra.mrb[0].mxu0 %v690
        %v842 = vpop.f32.mrb[0].mxu0
        %v843 = vadd.f32 0.0, %v842
        %v844 = vpop.f32.mrb[0].mxu0
        %v845 = vadd.f32 0.0, %v844
        %846 = vmatprep.mubr.f32.mxu0 0.0
        %847 = vmatmul.mubr.f32.gmra.mrb[0].mxu0 %v693
        %v848 = vpop.f32.mrb[0].mxu0
        %v849 = vadd.f32 0.0, %v848
        %v850 = vpop.f32.mrb[0].mxu0
        %v851 = vadd.f32 0.0, %v850
        %852 = vmatprep.mubr.f32.mxu0 0.0
        %853 = vmatmul.mubr.f32.gmra.mrb[0].mxu0 %v696
        %v854 = vpop.f32.mrb[0].mxu0
        %v855 = vadd.f32 0.0, %v854
        %v856 = vpop.f32.mrb[0].mxu0
        %v857 = vadd.f32 0.0, %v856
        %858 = vdwg.mxu0
        %v859 = vrot.slane %v615, 4
        %v860 = vadd.f32 %v615, %v859
        %v861 = vrot.slane %v860, 2
        %v862 = vadd.f32 %v860, %v861
        %v863 = vrot.slane %v862, 1
        %v864 = vadd.f32 %v862, %v863
        %v865 = vrot.slane %v616, 4
        %v866 = vadd.f32 %v616, %v865
        %v867 = vrot.slane %v866, 2
        %v868 = vadd.f32 %v866, %v867
        %v869 = vrot.slane %v868, 1
        %v870 = vadd.f32 %v868, %v869
        %vm871 = vcmp.lt.f32.partialorder %v765, 10.0
        %vm872 = vcmp.lt.f32.partialorder %v767, 10.0
        %vm873 = vcmp.lt.f32.partialorder %v771, 10.0
        %vm874 = vcmp.lt.f32.partialorder %v773, 10.0
        %vm875 = vcmp.lt.f32.partialorder %v777, 10.0
        %vm876 = vcmp.lt.f32.partialorder %v779, 10.0
        %vm877 = vcmp.lt.f32.partialorder %v783, 10.0
        %vm878 = vcmp.lt.f32.partialorder %v785, 10.0
        %vm879 = vcmp.lt.f32.partialorder %v789, 10.0
        %vm880 = vcmp.lt.f32.partialorder %v791, 10.0
        %vm881 = vcmp.lt.f32.partialorder %v795, 10.0
        %vm882 = vcmp.lt.f32.partialorder %v797, 10.0
        %vm883 = vcmp.lt.f32.partialorder %v801, 10.0
        %vm884 = vcmp.lt.f32.partialorder %v803, 10.0
        %vm885 = vcmp.lt.f32.partialorder %v807, 10.0
        %vm886 = vcmp.lt.f32.partialorder %v809, 10.0
        %vm887 = vcmp.lt.f32.partialorder %v813, 10.0
        %vm888 = vcmp.lt.f32.partialorder %v815, 10.0
        %vm889 = vcmp.lt.f32.partialorder %v819, 10.0
        %vm890 = vcmp.lt.f32.partialorder %v821, 10.0
        %vm891 = vcmp.lt.f32.partialorder %v825, 10.0
        %vm892 = vcmp.lt.f32.partialorder %v827, 10.0
        %vm893 = vcmp.lt.f32.partialorder %v831, 10.0
        %vm894 = vcmp.lt.f32.partialorder %v833, 10.0
        %vm895 = vcmp.lt.f32.partialorder %v837, 10.0
        %vm896 = vcmp.lt.f32.partialorder %v839, 10.0
        %vm897 = vcmp.lt.f32.partialorder %v843, 10.0
        %vm898 = vcmp.lt.f32.partialorder %v845, 10.0
        %vm899 = vcmp.lt.f32.partialorder %v849, 10.0
        %vm900 = vcmp.lt.f32.partialorder %v851, 10.0
        %vm901 = vcmp.lt.f32.partialorder %v855, 10.0
        %vm902 = vcmp.lt.f32.partialorder %v857, 10.0
        %v903 = vsel %vm871, 1, 0
        %v904 = vsel %vm872, 1, 0
        %v905 = vsel %vm873, 1, 0
        %v906 = vsel %vm874, 1, 0
        %v907 = vsel %vm875, 1, 0
        %v908 = vsel %vm876, 1, 0
        %v909 = vsel %vm877, 1, 0
        %v910 = vsel %vm878, 1, 0
        %v911 = vsel %vm879, 1, 0
        %v912 = vsel %vm880, 1, 0
        %v913 = vsel %vm881, 1, 0
        %v914 = vsel %vm882, 1, 0
        %v915 = vsel %vm883, 1, 0
        %v916 = vsel %vm884, 1, 0
        %v917 = vsel %vm885, 1, 0
        %v918 = vsel %vm886, 1, 0
        %v919 = vsel %vm887, 1, 0
        %v920 = vsel %vm888, 1, 0
        %v921 = vsel %vm889, 1, 0
        %v922 = vsel %vm890, 1, 0
        %v923 = vsel %vm891, 1, 0
        %v924 = vsel %vm892, 1, 0
        %v925 = vsel %vm893, 1, 0
        %v926 = vsel %vm894, 1, 0
        %v927 = vsel %vm895, 1, 0
        %v928 = vsel %vm896, 1, 0
        %v929 = vsel %vm897, 1, 0
        %v930 = vsel %vm898, 1, 0
        %v931 = vsel %vm899, 1, 0
        %v932 = vsel %vm900, 1, 0
        %v933 = vsel %vm901, 1, 0
        %v934 = vsel %vm902, 1, 0
        %v935 = vcvt.s32.f32 %v903
        %v936 = vcvt.s32.f32 %v904
        %v937 = vcvt.s32.f32 %v905
        %v938 = vcvt.s32.f32 %v906
        %v939 = vcvt.s32.f32 %v907
        %v940 = vcvt.s32.f32 %v908
        %v941 = vcvt.s32.f32 %v909
        %v942 = vcvt.s32.f32 %v910
        %v943 = vcvt.s32.f32 %v911
        %v944 = vcvt.s32.f32 %v912
        %v945 = vcvt.s32.f32 %v913
        %v946 = vcvt.s32.f32 %v914
        %v947 = vcvt.s32.f32 %v915
        %v948 = vcvt.s32.f32 %v916
        %v949 = vcvt.s32.f32 %v917
        %v950 = vcvt.s32.f32 %v918
        %v951 = vcvt.s32.f32 %v919
        %v952 = vcvt.s32.f32 %v920
        %v953 = vcvt.s32.f32 %v921
        %v954 = vcvt.s32.f32 %v922
        %v955 = vcvt.s32.f32 %v923
        %v956 = vcvt.s32.f32 %v924
        %v957 = vcvt.s32.f32 %v925
        %v958 = vcvt.s32.f32 %v926
        %v959 = vcvt.s32.f32 %v927
        %v960 = vcvt.s32.f32 %v928
        %v961 = vcvt.s32.f32 %v929
        %v962 = vcvt.s32.f32 %v930
        %v963 = vcvt.s32.f32 %v931
        %v964 = vcvt.s32.f32 %v932
        %v965 = vcvt.s32.f32 %v933
        %v966 = vcvt.s32.f32 %v934
        %v967 = vmul.f32 %v765, %v935
        %v968 = vmul.f32 %v767, %v936
        %v969 = vmul.f32 %v771, %v937
        %v970 = vmul.f32 %v773, %v938
        %v971 = vmul.f32 %v777, %v939
        %v972 = vmul.f32 %v779, %v940
        %v973 = vmul.f32 %v783, %v941
        %v974 = vmul.f32 %v785, %v942
        %v975 = vmul.f32 %v789, %v943
        %v976 = vmul.f32 %v791, %v944
        %v977 = vmul.f32 %v795, %v945
        %v978 = vmul.f32 %v797, %v946
        %v979 = vmul.f32 %v801, %v947
        %v980 = vmul.f32 %v803, %v948
        %v981 = vmul.f32 %v807, %v949
        %v982 = vmul.f32 %v809, %v950
        %v983 = vmul.f32 %v813, %v951
        %v984 = vmul.f32 %v815, %v952
        %v985 = vmul.f32 %v819, %v953
        %v986 = vmul.f32 %v821, %v954
        %v987 = vmul.f32 %v825, %v955
        %v988 = vmul.f32 %v827, %v956
        %v989 = vmul.f32 %v831, %v957
        %v990 = vmul.f32 %v833, %v958
        %v991 = vmul.f32 %v837, %v959
        %v992 = vmul.f32 %v839, %v960
        %v993 = vmul.f32 %v843, %v961
        %v994 = vmul.f32 %v845, %v962
        %v995 = vmul.f32 %v849, %v963
        %v996 = vmul.f32 %v851, %v964
        %v997 = vmul.f32 %v855, %v965
        %v998 = vmul.f32 %v857, %v966
        %vm999 = vcmp.gt.f32.partialorder %v765, 10.0
        %vm1000 = vcmp.gt.f32.partialorder %v767, 10.0
        %vm1001 = vcmp.gt.f32.partialorder %v771, 10.0
        %vm1002 = vcmp.gt.f32.partialorder %v773, 10.0
        %vm1003 = vcmp.gt.f32.partialorder %v777, 10.0
        %vm1004 = vcmp.gt.f32.partialorder %v779, 10.0
        %vm1005 = vcmp.gt.f32.partialorder %v783, 10.0
        %vm1006 = vcmp.gt.f32.partialorder %v785, 10.0
        %vm1007 = vcmp.gt.f32.partialorder %v789, 10.0
        %vm1008 = vcmp.gt.f32.partialorder %v791, 10.0
        %vm1009 = vcmp.gt.f32.partialorder %v795, 10.0
        %vm1010 = vcmp.gt.f32.partialorder %v797, 10.0
        %vm1011 = vcmp.gt.f32.partialorder %v801, 10.0
        %vm1012 = vcmp.gt.f32.partialorder %v803, 10.0
        %vm1013 = vcmp.gt.f32.partialorder %v807, 10.0
        %vm1014 = vcmp.gt.f32.partialorder %v809, 10.0
        %vm1015 = vcmp.gt.f32.partialorder %v813, 10.0
        %vm1016 = vcmp.gt.f32.partialorder %v815, 10.0
        %vm1017 = vcmp.gt.f32.partialorder %v819, 10.0
        %vm1018 = vcmp.gt.f32.partialorder %v821, 10.0
        %vm1019 = vcmp.gt.f32.partialorder %v825, 10.0
        %vm1020 = vcmp.gt.f32.partialorder %v827, 10.0
        %vm1021 = vcmp.gt.f32.partialorder %v831, 10.0
        %vm1022 = vcmp.gt.f32.partialorder %v833, 10.0
        %vm1023 = vcmp.gt.f32.partialorder %v837, 10.0
        %vm1024 = vcmp.gt.f32.partialorder %v839, 10.0
        %vm1025 = vcmp.gt.f32.partialorder %v843, 10.0
        %vm1026 = vcmp.gt.f32.partialorder %v845, 10.0
        %vm1027 = vcmp.gt.f32.partialorder %v849, 10.0
        %vm1028 = vcmp.gt.f32.partialorder %v851, 10.0
        %vm1029 = vcmp.gt.f32.partialorder %v855, 10.0
        %vm1030 = vcmp.gt.f32.partialorder %v857, 10.0
        %v1031 = vsel %vm999, 1, 0
        %v1032 = vsel %vm1000, 1, 0
        %v1033 = vsel %vm1001, 1, 0
        %v1034 = vsel %vm1002, 1, 0
        %v1035 = vsel %vm1003, 1, 0
        %v1036 = vsel %vm1004, 1, 0
        %v1037 = vsel %vm1005, 1, 0
        %v1038 = vsel %vm1006, 1, 0
        %v1039 = vsel %vm1007, 1, 0
        %v1040 = vsel %vm1008, 1, 0
        %v1041 = vsel %vm1009, 1, 0
        %v1042 = vsel %vm1010, 1, 0
        %v1043 = vsel %vm1011, 1, 0
        %v1044 = vsel %vm1012, 1, 0
        %v1045 = vsel %vm1013, 1, 0
        %v1046 = vsel %vm1014, 1, 0
        %v1047 = vsel %vm1015, 1, 0
        %v1048 = vsel %vm1016, 1, 0
        %v1049 = vsel %vm1017, 1, 0
        %v1050 = vsel %vm1018, 1, 0
        %v1051 = vsel %vm1019, 1, 0
        %v1052 = vsel %vm1020, 1, 0
        %v1053 = vsel %vm1021, 1, 0
        %v1054 = vsel %vm1022, 1, 0
        %v1055 = vsel %vm1023, 1, 0
        %v1056 = vsel %vm1024, 1, 0
        %v1057 = vsel %vm1025, 1, 0
        %v1058 = vsel %vm1026, 1, 0
        %v1059 = vsel %vm1027, 1, 0
        %v1060 = vsel %vm1028, 1, 0
        %v1061 = vsel %vm1029, 1, 0
        %v1062 = vsel %vm1030, 1, 0
        %v1063 = vcvt.s32.f32 %v1031
        %v1064 = vcvt.s32.f32 %v1032
        %v1065 = vcvt.s32.f32 %v1033
        %v1066 = vcvt.s32.f32 %v1034
        %v1067 = vcvt.s32.f32 %v1035
        %v1068 = vcvt.s32.f32 %v1036
        %v1069 = vcvt.s32.f32 %v1037
        %v1070 = vcvt.s32.f32 %v1038
        %v1071 = vcvt.s32.f32 %v1039
        %v1072 = vcvt.s32.f32 %v1040
        %v1073 = vcvt.s32.f32 %v1041
        %v1074 = vcvt.s32.f32 %v1042
        %v1075 = vcvt.s32.f32 %v1043
        %v1076 = vcvt.s32.f32 %v1044
        %v1077 = vcvt.s32.f32 %v1045
        %v1078 = vcvt.s32.f32 %v1046
        %v1079 = vcvt.s32.f32 %v1047
        %v1080 = vcvt.s32.f32 %v1048
        %v1081 = vcvt.s32.f32 %v1049
        %v1082 = vcvt.s32.f32 %v1050
        %v1083 = vcvt.s32.f32 %v1051
        %v1084 = vcvt.s32.f32 %v1052
        %v1085 = vcvt.s32.f32 %v1053
        %v1086 = vcvt.s32.f32 %v1054
        %v1087 = vcvt.s32.f32 %v1055
        %v1088 = vcvt.s32.f32 %v1056
        %v1089 = vcvt.s32.f32 %v1057
        %v1090 = vcvt.s32.f32 %v1058
        %v1091 = vcvt.s32.f32 %v1059
        %v1092 = vcvt.s32.f32 %v1060
        %v1093 = vcvt.s32.f32 %v1061
        %v1094 = vcvt.s32.f32 %v1062
        %v1095 = vmul.f32 %v1063, 10.0
        %v1096 = vmul.f32 %v1064, 10.0
        %v1097 = vmul.f32 %v1065, 10.0
        %v1098 = vmul.f32 %v1066, 10.0
        %v1099 = vmul.f32 %v1067, 10.0
        %v1100 = vmul.f32 %v1068, 10.0
        %v1101 = vmul.f32 %v1069, 10.0
        %v1102 = vmul.f32 %v1070, 10.0
        %v1103 = vmul.f32 %v1071, 10.0
        %v1104 = vmul.f32 %v1072, 10.0
        %v1105 = vmul.f32 %v1073, 10.0
        %v1106 = vmul.f32 %v1074, 10.0
        %v1107 = vmul.f32 %v1075, 10.0
        %v1108 = vmul.f32 %v1076, 10.0
        %v1109 = vmul.f32 %v1077, 10.0
        %v1110 = vmul.f32 %v1078, 10.0
        %v1111 = vmul.f32 %v1079, 10.0
        %v1112 = vmul.f32 %v1080, 10.0
        %v1113 = vmul.f32 %v1081, 10.0
        %v1114 = vmul.f32 %v1082, 10.0
        %v1115 = vmul.f32 %v1083, 10.0
        %v1116 = vmul.f32 %v1084, 10.0
        %v1117 = vmul.f32 %v1085, 10.0
        %v1118 = vmul.f32 %v1086, 10.0
        %v1119 = vmul.f32 %v1087, 10.0
        %v1120 = vmul.f32 %v1088, 10.0
        %v1121 = vmul.f32 %v1089, 10.0
        %v1122 = vmul.f32 %v1090, 10.0
        %v1123 = vmul.f32 %v1091, 10.0
        %v1124 = vmul.f32 %v1092, 10.0
        %v1125 = vmul.f32 %v1093, 10.0
        %v1126 = vmul.f32 %v1094, 10.0
        %v1127 = vadd.f32 %v967, %v1095
        %v1128 = vadd.f32 %v968, %v1096
        %v1129 = vadd.f32 %v969, %v1097
        %v1130 = vadd.f32 %v970, %v1098
        %v1131 = vadd.f32 %v971, %v1099
        %v1132 = vadd.f32 %v972, %v1100
        %v1133 = vadd.f32 %v973, %v1101
        %v1134 = vadd.f32 %v974, %v1102
        %v1135 = vadd.f32 %v975, %v1103
        %v1136 = vadd.f32 %v976, %v1104
        %v1137 = vadd.f32 %v977, %v1105
        %v1138 = vadd.f32 %v978, %v1106
        %v1139 = vadd.f32 %v979, %v1107
        %v1140 = vadd.f32 %v980, %v1108
        %v1141 = vadd.f32 %v981, %v1109
        %v1142 = vadd.f32 %v982, %v1110
        %v1143 = vadd.f32 %v983, %v1111
        %v1144 = vadd.f32 %v984, %v1112
        %v1145 = vadd.f32 %v985, %v1113
        %v1146 = vadd.f32 %v986, %v1114
        %v1147 = vadd.f32 %v987, %v1115
        %v1148 = vadd.f32 %v988, %v1116
        %v1149 = vadd.f32 %v989, %v1117
        %v1150 = vadd.f32 %v990, %v1118
        %v1151 = vadd.f32 %v991, %v1119
        %v1152 = vadd.f32 %v992, %v1120
        %v1153 = vadd.f32 %v993, %v1121
        %v1154 = vadd.f32 %v994, %v1122
        %v1155 = vadd.f32 %v995, %v1123
        %v1156 = vadd.f32 %v996, %v1124
        %v1157 = vadd.f32 %v997, %v1125
        %v1158 = vadd.f32 %v998, %v1126
        %vm1159 = vcmp.gt.f32.partialorder %v1127, -10.0
        %vm1160 = vcmp.gt.f32.partialorder %v1128, -10.0
        %vm1161 = vcmp.gt.f32.partialorder %v1129, -10.0
        %vm1162 = vcmp.gt.f32.partialorder %v1130, -10.0
        %vm1163 = vcmp.gt.f32.partialorder %v1131, -10.0
        %vm1164 = vcmp.gt.f32.partialorder %v1132, -10.0
        %vm1165 = vcmp.gt.f32.partialorder %v1133, -10.0
        %vm1166 = vcmp.gt.f32.partialorder %v1134, -10.0
        %vm1167 = vcmp.gt.f32.partialorder %v1135, -10.0
        %vm1168 = vcmp.gt.f32.partialorder %v1136, -10.0
        %vm1169 = vcmp.gt.f32.partialorder %v1137, -10.0
        %vm1170 = vcmp.gt.f32.partialorder %v1138, -10.0
        %vm1171 = vcmp.gt.f32.partialorder %v1139, -10.0
        %vm1172 = vcmp.gt.f32.partialorder %v1140, -10.0
        %vm1173 = vcmp.gt.f32.partialorder %v1141, -10.0
        %vm1174 = vcmp.gt.f32.partialorder %v1142, -10.0
        %vm1175 = vcmp.gt.f32.partialorder %v1143, -10.0
        %vm1176 = vcmp.gt.f32.partialorder %v1144, -10.0
        %vm1177 = vcmp.gt.f32.partialorder %v1145, -10.0
        %vm1178 = vcmp.gt.f32.partialorder %v1146, -10.0
        %vm1179 = vcmp.gt.f32.partialorder %v1147, -10.0
        %vm1180 = vcmp.gt.f32.partialorder %v1148, -10.0
        %vm1181 = vcmp.gt.f32.partialorder %v1149, -10.0
        %vm1182 = vcmp.gt.f32.partialorder %v1150, -10.0
        %vm1183 = vcmp.gt.f32.partialorder %v1151, -10.0
        %vm1184 = vcmp.gt.f32.partialorder %v1152, -10.0
        %vm1185 = vcmp.gt.f32.partialorder %v1153, -10.0
        %vm1186 = vcmp.gt.f32.partialorder %v1154, -10.0
        %vm1187 = vcmp.gt.f32.partialorder %v1155, -10.0
        %vm1188 = vcmp.gt.f32.partialorder %v1156, -10.0
        %vm1189 = vcmp.gt.f32.partialorder %v1157, -10.0
        %vm1190 = vcmp.gt.f32.partialorder %v1158, -10.0
        %v1191 = vsel %vm1159, 1, 0
        %v1192 = vsel %vm1160, 1, 0
        %v1193 = vsel %vm1161, 1, 0
        %v1194 = vsel %vm1162, 1, 0
        %v1195 = vsel %vm1163, 1, 0
        %v1196 = vsel %vm1164, 1, 0
        %v1197 = vsel %vm1165, 1, 0
        %v1198 = vsel %vm1166, 1, 0
        %v1199 = vsel %vm1167, 1, 0
        %v1200 = vsel %vm1168, 1, 0
        %v1201 = vsel %vm1169, 1, 0
        %v1202 = vsel %vm1170, 1, 0
        %v1203 = vsel %vm1171, 1, 0
        %v1204 = vsel %vm1172, 1, 0
        %v1205 = vsel %vm1173, 1, 0
        %v1206 = vsel %vm1174, 1, 0
        %v1207 = vsel %vm1175, 1, 0
        %v1208 = vsel %vm1176, 1, 0
        %v1209 = vsel %vm1177, 1, 0
        %v1210 = vsel %vm1178, 1, 0
        %v1211 = vsel %vm1179, 1, 0
        %v1212 = vsel %vm1180, 1, 0
        %v1213 = vsel %vm1181, 1, 0
        %v1214 = vsel %vm1182, 1, 0
        %v1215 = vsel %vm1183, 1, 0
        %v1216 = vsel %vm1184, 1, 0
        %v1217 = vsel %vm1185, 1, 0
        %v1218 = vsel %vm1186, 1, 0
        %v1219 = vsel %vm1187, 1, 0
        %v1220 = vsel %vm1188, 1, 0
        %v1221 = vsel %vm1189, 1, 0
        %v1222 = vsel %vm1190, 1, 0
        %v1223 = vcvt.s32.f32 %v1191
        %v1224 = vcvt.s32.f32 %v1192
        %v1225 = vcvt.s32.f32 %v1193
        %v1226 = vcvt.s32.f32 %v1194
        %v1227 = vcvt.s32.f32 %v1195
        %v1228 = vcvt.s32.f32 %v1196
        %v1229 = vcvt.s32.f32 %v1197
        %v1230 = vcvt.s32.f32 %v1198
        %v1231 = vcvt.s32.f32 %v1199
        %v1232 = vcvt.s32.f32 %v1200
        %v1233 = vcvt.s32.f32 %v1201
        %v1234 = vcvt.s32.f32 %v1202
        %v1235 = vcvt.s32.f32 %v1203
        %v1236 = vcvt.s32.f32 %v1204
        %v1237 = vcvt.s32.f32 %v1205
        %v1238 = vcvt.s32.f32 %v1206
        %v1239 = vcvt.s32.f32 %v1207
        %v1240 = vcvt.s32.f32 %v1208
        %v1241 = vcvt.s32.f32 %v1209
        %v1242 = vcvt.s32.f32 %v1210
        %v1243 = vcvt.s32.f32 %v1211
        %v1244 = vcvt.s32.f32 %v1212
        %v1245 = vcvt.s32.f32 %v1213
        %v1246 = vcvt.s32.f32 %v1214
        %v1247 = vcvt.s32.f32 %v1215
        %v1248 = vcvt.s32.f32 %v1216
        %v1249 = vcvt.s32.f32 %v1217
        %v1250 = vcvt.s32.f32 %v1218
        %v1251 = vcvt.s32.f32 %v1219
        %v1252 = vcvt.s32.f32 %v1220
        %v1253 = vcvt.s32.f32 %v1221
        %v1254 = vcvt.s32.f32 %v1222
        %v1255 = vmul.f32 %v1127, %v1223
        %v1256 = vmul.f32 %v1128, %v1224
        %v1257 = vmul.f32 %v1129, %v1225
        %v1258 = vmul.f32 %v1130, %v1226
        %v1259 = vmul.f32 %v1131, %v1227
        %v1260 = vmul.f32 %v1132, %v1228
        %v1261 = vmul.f32 %v1133, %v1229
        %v1262 = vmul.f32 %v1134, %v1230
        %v1263 = vmul.f32 %v1135, %v1231
        %v1264 = vmul.f32 %v1136, %v1232
        %v1265 = vmul.f32 %v1137, %v1233
        %v1266 = vmul.f32 %v1138, %v1234
        %v1267 = vmul.f32 %v1139, %v1235
        %v1268 = vmul.f32 %v1140, %v1236
        %v1269 = vmul.f32 %v1141, %v1237
        %v1270 = vmul.f32 %v1142, %v1238
        %v1271 = vmul.f32 %v1143, %v1239
        %v1272 = vmul.f32 %v1144, %v1240
        %v1273 = vmul.f32 %v1145, %v1241
        %v1274 = vmul.f32 %v1146, %v1242
        %v1275 = vmul.f32 %v1147, %v1243
        %v1276 = vmul.f32 %v1148, %v1244
        %v1277 = vmul.f32 %v1149, %v1245
        %v1278 = vmul.f32 %v1150, %v1246
        %v1279 = vmul.f32 %v1151, %v1247
        %v1280 = vmul.f32 %v1152, %v1248
        %v1281 = vmul.f32 %v1153, %v1249
        %v1282 = vmul.f32 %v1154, %v1250
        %v1283 = vmul.f32 %v1155, %v1251
        %v1284 = vmul.f32 %v1156, %v1252
        %v1285 = vmul.f32 %v1157, %v1253
        %v1286 = vmul.f32 %v1158, %v1254
        %vm1287 = vcmp.lt.f32.partialorder %v1127, -10.0
        %vm1288 = vcmp.lt.f32.partialorder %v1128, -10.0
        %vm1289 = vcmp.lt.f32.partialorder %v1129, -10.0
        %vm1290 = vcmp.lt.f32.partialorder %v1130, -10.0
        %vm1291 = vcmp.lt.f32.partialorder %v1131, -10.0
        %vm1292 = vcmp.lt.f32.partialorder %v1132, -10.0
        %vm1293 = vcmp.lt.f32.partialorder %v1133, -10.0
        %vm1294 = vcmp.lt.f32.partialorder %v1134, -10.0
        %vm1295 = vcmp.lt.f32.partialorder %v1135, -10.0
        %vm1296 = vcmp.lt.f32.partialorder %v1136, -10.0
        %vm1297 = vcmp.lt.f32.partialorder %v1137, -10.0
        %vm1298 = vcmp.lt.f32.partialorder %v1138, -10.0
        %vm1299 = vcmp.lt.f32.partialorder %v1139, -10.0
        %vm1300 = vcmp.lt.f32.partialorder %v1140, -10.0
        %vm1301 = vcmp.lt.f32.partialorder %v1141, -10.0
        %vm1302 = vcmp.lt.f32.partialorder %v1142, -10.0
        %vm1303 = vcmp.lt.f32.partialorder %v1143, -10.0
        %vm1304 = vcmp.lt.f32.partialorder %v1144, -10.0
        %vm1305 = vcmp.lt.f32.partialorder %v1145, -10.0
        %vm1306 = vcmp.lt.f32.partialorder %v1146, -10.0
        %vm1307 = vcmp.lt.f32.partialorder %v1147, -10.0
        %vm1308 = vcmp.lt.f32.partialorder %v1148, -10.0
        %vm1309 = vcmp.lt.f32.partialorder %v1149, -10.0
        %vm1310 = vcmp.lt.f32.partialorder %v1150, -10.0
        %vm1311 = vcmp.lt.f32.partialorder %v1151, -10.0
        %vm1312 = vcmp.lt.f32.partialorder %v1152, -10.0
        %vm1313 = vcmp.lt.f32.partialorder %v1153, -10.0
        %vm1314 = vcmp.lt.f32.partialorder %v1154, -10.0
        %vm1315 = vcmp.lt.f32.partialorder %v1155, -10.0
        %vm1316 = vcmp.lt.f32.partialorder %v1156, -10.0
        %vm1317 = vcmp.lt.f32.partialorder %v1157, -10.0
        %vm1318 = vcmp.lt.f32.partialorder %v1158, -10.0
        %v1319 = vsel %vm1287, 1, 0
        %v1320 = vsel %vm1288, 1, 0
        %v1321 = vsel %vm1289, 1, 0
        %v1322 = vsel %vm1290, 1, 0
        %v1323 = vsel %vm1291, 1, 0
        %v1324 = vsel %vm1292, 1, 0
        %v1325 = vsel %vm1293, 1, 0
        %v1326 = vsel %vm1294, 1, 0
        %v1327 = vsel %vm1295, 1, 0
        %v1328 = vsel %vm1296, 1, 0
        %v1329 = vsel %vm1297, 1, 0
        %v1330 = vsel %vm1298, 1, 0
        %v1331 = vsel %vm1299, 1, 0
        %v1332 = vsel %vm1300, 1, 0
        %v1333 = vsel %vm1301, 1, 0
        %v1334 = vsel %vm1302, 1, 0
        %v1335 = vsel %vm1303, 1, 0
        %v1336 = vsel %vm1304, 1, 0
        %v1337 = vsel %vm1305, 1, 0
        %v1338 = vsel %vm1306, 1, 0
        %v1339 = vsel %vm1307, 1, 0
        %v1340 = vsel %vm1308, 1, 0
        %v1341 = vsel %vm1309, 1, 0
        %v1342 = vsel %vm1310, 1, 0
        %v1343 = vsel %vm1311, 1, 0
        %v1344 = vsel %vm1312, 1, 0
        %v1345 = vsel %vm1313, 1, 0
        %v1346 = vsel %vm1314, 1, 0
        %v1347 = vsel %vm1315, 1, 0
        %v1348 = vsel %vm1316, 1, 0
        %v1349 = vsel %vm1317, 1, 0
        %v1350 = vsel %vm1318, 1, 0
        %v1351 = vcvt.s32.f32 %v1319
        %v1352 = vcvt.s32.f32 %v1320
        %v1353 = vcvt.s32.f32 %v1321
        %v1354 = vcvt.s32.f32 %v1322
        %v1355 = vcvt.s32.f32 %v1323
        %v1356 = vcvt.s32.f32 %v1324
        %v1357 = vcvt.s32.f32 %v1325
        %v1358 = vcvt.s32.f32 %v1326
        %v1359 = vcvt.s32.f32 %v1327
        %v1360 = vcvt.s32.f32 %v1328
        %v1361 = vcvt.s32.f32 %v1329
        %v1362 = vcvt.s32.f32 %v1330
        %v1363 = vcvt.s32.f32 %v1331
        %v1364 = vcvt.s32.f32 %v1332
        %v1365 = vcvt.s32.f32 %v1333
        %v1366 = vcvt.s32.f32 %v1334
        %v1367 = vcvt.s32.f32 %v1335
        %v1368 = vcvt.s32.f32 %v1336
        %v1369 = vcvt.s32.f32 %v1337
        %v1370 = vcvt.s32.f32 %v1338
        %v1371 = vcvt.s32.f32 %v1339
        %v1372 = vcvt.s32.f32 %v1340
        %v1373 = vcvt.s32.f32 %v1341
        %v1374 = vcvt.s32.f32 %v1342
        %v1375 = vcvt.s32.f32 %v1343
        %v1376 = vcvt.s32.f32 %v1344
        %v1377 = vcvt.s32.f32 %v1345
        %v1378 = vcvt.s32.f32 %v1346
        %v1379 = vcvt.s32.f32 %v1347
        %v1380 = vcvt.s32.f32 %v1348
        %v1381 = vcvt.s32.f32 %v1349
        %v1382 = vcvt.s32.f32 %v1350
        %v1383 = vmul.f32 %v1351, 10.0
        %v1384 = vmul.f32 %v1352, 10.0
        %v1385 = vmul.f32 %v1353, 10.0
        %v1386 = vmul.f32 %v1354, 10.0
        %v1387 = vmul.f32 %v1355, 10.0
        %v1388 = vmul.f32 %v1356, 10.0
        %v1389 = vmul.f32 %v1357, 10.0
        %v1390 = vmul.f32 %v1358, 10.0
        %v1391 = vmul.f32 %v1359, 10.0
        %v1392 = vmul.f32 %v1360, 10.0
        %v1393 = vmul.f32 %v1361, 10.0
        %v1394 = vmul.f32 %v1362, 10.0
        %v1395 = vmul.f32 %v1363, 10.0
        %v1396 = vmul.f32 %v1364, 10.0
        %v1397 = vmul.f32 %v1365, 10.0
        %v1398 = vmul.f32 %v1366, 10.0
        %v1399 = vmul.f32 %v1367, 10.0
        %v1400 = vmul.f32 %v1368, 10.0
        %v1401 = vmul.f32 %v1369, 10.0
        %v1402 = vmul.f32 %v1370, 10.0
        %v1403 = vmul.f32 %v1371, 10.0
        %v1404 = vmul.f32 %v1372, 10.0
        %v1405 = vmul.f32 %v1373, 10.0
        %v1406 = vmul.f32 %v1374, 10.0
        %v1407 = vmul.f32 %v1375, 10.0
        %v1408 = vmul.f32 %v1376, 10.0
        %v1409 = vmul.f32 %v1377, 10.0
        %v1410 = vmul.f32 %v1378, 10.0
        %v1411 = vmul.f32 %v1379, 10.0
        %v1412 = vmul.f32 %v1380, 10.0
        %v1413 = vmul.f32 %v1381, 10.0
        %v1414 = vmul.f32 %v1382, 10.0
        %v1415 = vsub.f32 %v1255, %v1383
        %v1416 = vsub.f32 %v1256, %v1384
        %v1417 = vsub.f32 %v1257, %v1385
        %v1418 = vsub.f32 %v1258, %v1386
        %v1419 = vsub.f32 %v1259, %v1387
        %v1420 = vsub.f32 %v1260, %v1388
        %v1421 = vsub.f32 %v1261, %v1389
        %v1422 = vsub.f32 %v1262, %v1390
        %v1423 = vsub.f32 %v1263, %v1391
        %v1424 = vsub.f32 %v1264, %v1392
        %v1425 = vsub.f32 %v1265, %v1393
        %v1426 = vsub.f32 %v1266, %v1394
        %v1427 = vsub.f32 %v1267, %v1395
        %v1428 = vsub.f32 %v1268, %v1396
        %v1429 = vsub.f32 %v1269, %v1397
        %v1430 = vsub.f32 %v1270, %v1398
        %v1431 = vsub.f32 %v1271, %v1399
        %v1432 = vsub.f32 %v1272, %v1400
        %v1433 = vsub.f32 %v1273, %v1401
        %v1434 = vsub.f32 %v1274, %v1402
        %v1435 = vsub.f32 %v1275, %v1403
        %v1436 = vsub.f32 %v1276, %v1404
        %v1437 = vsub.f32 %v1277, %v1405
        %v1438 = vsub.f32 %v1278, %v1406
        %v1439 = vsub.f32 %v1279, %v1407
        %v1440 = vsub.f32 %v1280, %v1408
        %v1441 = vsub.f32 %v1281, %v1409
        %v1442 = vsub.f32 %v1282, %v1410
        %v1443 = vsub.f32 %v1283, %v1411
        %v1444 = vsub.f32 %v1284, %v1412
        %v1445 = vsub.f32 %v1285, %v1413
        %v1446 = vsub.f32 %v1286, %v1414
        %v1447 = vmul.f32 %v1415, 0.01
        %v1448 = vmul.f32 %v1416, 0.01
        %v1449 = vmul.f32 %v1417, 0.01
        %v1450 = vmul.f32 %v1418, 0.01
        %v1451 = vmul.f32 %v1419, 0.01
        %v1452 = vmul.f32 %v1420, 0.01
        %v1453 = vmul.f32 %v1421, 0.01
        %v1454 = vmul.f32 %v1422, 0.01
        %v1455 = vmul.f32 %v1423, 0.01
        %v1456 = vmul.f32 %v1424, 0.01
        %v1457 = vmul.f32 %v1425, 0.01
        %v1458 = vmul.f32 %v1426, 0.01
        %v1459 = vmul.f32 %v1427, 0.01
        %v1460 = vmul.f32 %v1428, 0.01
        %v1461 = vmul.f32 %v1429, 0.01
        %v1462 = vmul.f32 %v1430, 0.01
        %v1463 = vmul.f32 %v1431, 0.01
        %v1464 = vmul.f32 %v1432, 0.01
        %v1465 = vmul.f32 %v1433, 0.01
        %v1466 = vmul.f32 %v1434, 0.01
        %v1467 = vmul.f32 %v1435, 0.01
        %v1468 = vmul.f32 %v1436, 0.01
        %v1469 = vmul.f32 %v1437, 0.01
        %v1470 = vmul.f32 %v1438, 0.01
        %v1471 = vmul.f32 %v1439, 0.01
        %v1472 = vmul.f32 %v1440, 0.01
        %v1473 = vmul.f32 %v1441, 0.01
        %v1474 = vmul.f32 %v1442, 0.01
        %v1475 = vmul.f32 %v1443, 0.01
        %v1476 = vmul.f32 %v1444, 0.01
        %v1477 = vmul.f32 %v1445, 0.01
        %v1478 = vmul.f32 %v1446, 0.01
        %v1479 = vsub.f32 %v498, %v1447
        %v1480 = vsub.f32 %v499, %v1448
        %v1481 = vsub.f32 %v500, %v1449
        %v1482 = vsub.f32 %v501, %v1450
        %v1483 = vsub.f32 %v502, %v1451
        %v1484 = vsub.f32 %v503, %v1452
        %v1485 = vsub.f32 %v504, %v1453
        %v1486 = vsub.f32 %v505, %v1454
        %v1487 = vsub.f32 %v506, %v1455
        %v1488 = vsub.f32 %v507, %v1456
        %v1489 = vsub.f32 %v508, %v1457
        %v1490 = vsub.f32 %v509, %v1458
        %v1491 = vsub.f32 %v510, %v1459
        %v1492 = vsub.f32 %v511, %v1460
        %v1493 = vsub.f32 %v512, %v1461
        %v1494 = vsub.f32 %v513, %v1462
        %v1495 = vsub.f32 %v514, %v1463
        %v1496 = vsub.f32 %v515, %v1464
        %v1497 = vsub.f32 %v516, %v1465
        %v1498 = vsub.f32 %v517, %v1466
        %v1499 = vsub.f32 %v518, %v1467
        %v1500 = vsub.f32 %v519, %v1468
        %v1501 = vsub.f32 %v520, %v1469
        %v1502 = vsub.f32 %v521, %v1470
        %v1503 = vsub.f32 %v522, %v1471
        %v1504 = vsub.f32 %v523, %v1472
        %v1505 = vsub.f32 %v524, %v1473
        %v1506 = vsub.f32 %v525, %v1474
        %v1507 = vsub.f32 %v526, %v1475
        %v1508 = vsub.f32 %v527, %v1476
        %v1509 = vsub.f32 %v528, %v1477
        %v1510 = vsub.f32 %v529, %v1478
        %1511 = vst [vmem:[#allocation2] sm:$0xff] %v1479
        %1512 = vst [vmem:[#allocation2 + $0x8] sm:$0xff] %v1480
        %1513 = vst [vmem:[#allocation2 + $0x10] sm:$0xff] %v1481
        %1514 = vst [vmem:[#allocation2 + $0x18] sm:$0xff] %v1482
        %1515 = vst [vmem:[#allocation2 + $0x20] sm:$0xff] %v1483
        %1516 = vst [vmem:[#allocation2 + $0x28] sm:$0xff] %v1484
        %1517 = vst [vmem:[#allocation2 + $0x30] sm:$0xff] %v1485
        %1518 = vst [vmem:[#allocation2 + $0x38] sm:$0xff] %v1486
        %1519 = vst [vmem:[#allocation2 + $0x40] sm:$0xff] %v1487
        %1520 = vst [vmem:[#allocation2 + $0x48] sm:$0xff] %v1488
        %1521 = vst [vmem:[#allocation2 + $0x50] sm:$0xff] %v1489
        %1522 = vst [vmem:[#allocation2 + $0x58] sm:$0xff] %v1490
        %1523 = vst [vmem:[#allocation2 + $0x60] sm:$0xff] %v1491
        %1524 = vst [vmem:[#allocation2 + $0x68] sm:$0xff] %v1492
        %1525 = vst [vmem:[#allocation2 + $0x70] sm:$0xff] %v1493
        %1526 = vst [vmem:[#allocation2 + $0x78] sm:$0xff] %v1494
        %1527 = vst [vmem:[#allocation2 + $0x80] sm:$0xff] %v1495
        %1528 = vst [vmem:[#allocation2 + $0x88] sm:$0xff] %v1496
        %1529 = vst [vmem:[#allocation2 + $0x90] sm:$0xff] %v1497
        %1530 = vst [vmem:[#allocation2 + $0x98] sm:$0xff] %v1498
        %1531 = vst [vmem:[#allocation2 + $0xa0] sm:$0xff] %v1499
        %1532 = vst [vmem:[#allocation2 + $0xa8] sm:$0xff] %v1500
        %1533 = vst [vmem:[#allocation2 + $0xb0] sm:$0xff] %v1501
        %1534 = vst [vmem:[#allocation2 + $0xb8] sm:$0xff] %v1502
        %1535 = vst [vmem:[#allocation2 + $0xc0] sm:$0xff] %v1503
        %1536 = vst [vmem:[#allocation2 + $0xc8] sm:$0xff] %v1504
        %1537 = vst [vmem:[#allocation2 + $0xd0] sm:$0xff] %v1505
        %1538 = vst [vmem:[#allocation2 + $0xd8] sm:$0xff] %v1506
        %1539 = vst [vmem:[#allocation2 + $0xe0] sm:$0xff] %v1507
        %1540 = vst [vmem:[#allocation2 + $0xe8] sm:$0xff] %v1508
        %1541 = vst [vmem:[#allocation2 + $0xf0] sm:$0xff] %v1509
        %1542 = vst [vmem:[#allocation2 + $0xf8] sm:$0xff] %v1510
        %v1543 = vld [vmem:[#allocation3] sm:$0x3]
        %vm1544 = vcmp.lt.f32.partialorder %v864, 10.0
        %vm1545 = vcmp.lt.f32.partialorder %v870, 10.0
        %v1546 = vsel %vm1544, 1, 0
        %v1547 = vsel %vm1545, 1, 0
        %v1548 = vcvt.s32.f32 %v1546
        %v1549 = vcvt.s32.f32 %v1547
        %v1550 = vmul.f32 %v864, %v1548
        %v1551 = vmul.f32 %v870, %v1549
        %vm1552 = vcmp.gt.f32.partialorder %v864, 10.0
        %vm1553 = vcmp.gt.f32.partialorder %v870, 10.0
        %v1554 = vsel %vm1552, 1, 0
        %v1555 = vsel %vm1553, 1, 0
        %v1556 = vcvt.s32.f32 %v1554
        %v1557 = vcvt.s32.f32 %v1555
        %v1558 = vmul.f32 %v1556, 10.0
        %v1559 = vmul.f32 %v1557, 10.0
        %v1560 = vadd.f32 %v1550, %v1558
        %v1561 = vadd.f32 %v1551, %v1559
        %vm1562 = vcmp.gt.f32.partialorder %v1560, -10.0
        %vm1563 = vcmp.gt.f32.partialorder %v1561, -10.0
        %v1564 = vsel %vm1562, 1, 0
        %v1565 = vsel %vm1563, 1, 0
        %v1566 = vcvt.s32.f32 %v1564
        %v1567 = vcvt.s32.f32 %v1565
        %v1568 = vmul.f32 %v1560, %v1566
        %v1569 = vmul.f32 %v1561, %v1567
        %vm1570 = vcmp.lt.f32.partialorder %v1560, -10.0
        %vm1571 = vcmp.lt.f32.partialorder %v1561, -10.0
        %v1572 = vsel %vm1570, 1, 0
        %v1573 = vsel %vm1571, 1, 0
        %v1574 = vcvt.s32.f32 %v1572
        %v1575 = vcvt.s32.f32 %v1573
        %v1576 = vmul.f32 %v1574, 10.0
        %v1577 = vmul.f32 %v1575, 10.0
        %v1578 = vsub.f32 %v1568, %v1576
        %v1579 = vsub.f32 %v1569, %v1577
        %v1580 = vmul.f32 %v1578, 0.01
        %v1581 = vmul.f32 %v1579, 0.01
        %v1584 = vcombine.low %v1580, %v1581
        %v1586 = vunpack.c.l.s4 1966171168
        %v1587 = vunpack.c.0.s8 %v1586
        %v1588 = vlaneseq
        %v1589 = vshrl.u32 %v1588, 7
        %v1590 = vsub.s32 %v1587, %v1589
        %v1591 = vrot.slane %v1584, %v1590
        %v1593 = vunpack.c.l.s4 1966171168
        %v1594 = vunpack.c.0.s8 %v1593
        %v1595 = vlaneseq
        %v1596 = vshrl.u32 %v1595, 7
        %v1597 = vsub.s32 %v1594, %v1596
        %v1598 = vrot.slane %v1591, %v1597
        %v1600 = vsub.f32 %v1543, %v1598
        %v1601 = vlaneseq
        %vm1602 = vcmp.ge.s32.totalorder %v1601, 0
        %vm1603 = vcmp.lt.s32.totalorder %v1601, 256
        %vm1604 = vmand %vm1602, %vm1603
        %1605 = vst.msk [vmem:[#allocation3] sm:$0x3] %vm1604, %v1600
        %p1606 = scmp.eq.s32.totalorder %s23, 2
        // Predicated region
        $region65: #{memory_meta_learner_forward.1} parent=47 // pred_check
          %p1607 = pneg %p1606
        $region66: #{memory_meta_learner_forward.1} parent=47 // pred_check_branch
          %1609 = sbr.rel (%p1607) target = $region68
        $region67: #{memory_meta_learner_forward.1} parent=47 // pred_region
          %v1610 = vld [vmem:[%s5] sm:$0xff]
          %v1611 = vld [vmem:[%s5 + $0x8] sm:$0xff]
          %1612 = vmatprep.subr.mxu0 0.0
          %1613 = vmatpush1.msra.mxu0 %v386
          %1614 = vmatprep.subr.mxu0 0.0
          %1615 = vmatpush1.msra.mxu0 %v387
          %1616 = vmatprep.subr.mxu0 0.0
          %1617 = vmatpush1.msra.mxu0 %v388
          %1618 = vmatprep.subr.mxu0 0.0
          %1619 = vmatpush1.msra.mxu0 %v389
          %1620 = vmatprep.subr.mxu0 0.0
          %1621 = vmatpush1.msra.mxu0 %v390
          %1622 = vmatprep.subr.mxu0 0.0
          %1623 = vmatpush1.msra.mxu0 %v391
          %1624 = vmatprep.subr.mxu0 0.0
          %1625 = vmatpush1.msra.mxu0 %v392
          %1626 = vmatprep.subr.mxu0 0.0
          %1627 = vmatpush1.msra.mxu0 %v393
          %1628 = vmatprep.subr.mxu0 0.0
          %1629 = vmatpush1.msra.mxu0 %v394
          %1630 = vmatprep.subr.mxu0 0.0
          %1631 = vmatpush1.msra.mxu0 %v395
          %1632 = vmatprep.subr.mxu0 0.0
          %1633 = vmatpush1.msra.mxu0 %v396
          %1634 = vmatprep.subr.mxu0 0.0
          %1635 = vmatpush1.msra.mxu0 %v397
          %1636 = vmatprep.subr.mxu0 0.0
          %1637 = vmatpush1.msra.mxu0 %v398
          %1638 = vmatprep.subr.mxu0 0.0
          %1639 = vmatpush1.msra.mxu0 %v399
          %1640 = vmatprep.subr.mxu0 0.0
          %1641 = vmatpush1.msra.mxu0 %v400
          %1642 = vmatprep.subr.mxu0 0.0
          %1643 = vmatpush1.msra.mxu0 %v401
          %1644 = vmatprep.subr.mxu0 0.0
          %1645 = vmatpush1.msra.mxu0 %v402
          %1646 = vmatprep.subr.mxu0 0.0
          %1647 = vmatpush1.msra.mxu0 %v403
          %1648 = vmatprep.subr.mxu0 0.0
          %1649 = vmatpush1.msra.mxu0 %v404
          %1650 = vmatprep.subr.mxu0 0.0
          %1651 = vmatpush1.msra.mxu0 %v405
          %1652 = vmatprep.subr.mxu0 0.0
          %1653 = vmatpush1.msra.mxu0 %v406
          %1654 = vmatprep.subr.mxu0 0.0
          %1655 = vmatpush1.msra.mxu0 %v407
          %1656 = vmatprep.subr.mxu0 0.0
          %1657 = vmatpush1.msra.mxu0 %v408
          %1658 = vmatprep.subr.mxu0 0.0
          %1659 = vmatpush1.msra.mxu0 %v409
          %1660 = vmatprep.subr.mxu0 0.0
          %1661 = vmatpush1.msra.mxu0 %v410
          %1662 = vmatprep.subr.mxu0 0.0
          %1663 = vmatpush1.msra.mxu0 %v411
          %1664 = vmatprep.subr.mxu0 0.0
          %1665 = vmatpush1.msra.mxu0 %v412
          %1666 = vmatprep.subr.mxu0 0.0
          %1667 = vmatpush1.msra.mxu0 %v413
          %1668 = vmatprep.subr.mxu0 0.0
          %1669 = vmatpush1.msra.mxu0 %v414
          %1670 = vmatprep.subr.mxu0 0.0
          %1671 = vmatpush1.msra.mxu0 %v415
          %1672 = vmatprep.subr.mxu0 0.0
          %1673 = vmatpush1.msra.mxu0 %v416
          %1674 = vmatprep.subr.mxu0 0.0
          %1675 = vmatpush1.msra.mxu0 %v417
          %1676 = vmatprep.mubr.f32.mxu0 %v1611
          %1677 = vmatmul.mubr.f32.gmra.mrb[0].mxu0 %v1610
          %v1678 = vpop.f32.mrb[0].mxu0
          %v1679 = vadd.f32 %v425, %v1678
          %v1680 = vpop.f32.mrb[0].mxu0
          %1681 = vdwg.mxu0
          %v1682 = vmax.f32 %v1679, 0.0
          %v1683 = vld [vmem:[#allocation2] sm:$0xff]
          %v1684 = vld [vmem:[#allocation2 + $0x8] sm:$0xff]
          %v1685 = vld [vmem:[#allocation2 + $0x10] sm:$0xff]
          %v1686 = vld [vmem:[#allocation2 + $0x18] sm:$0xff]
          %v1687 = vld [vmem:[#allocation2 + $0x20] sm:$0xff]
          %v1688 = vld [vmem:[#allocation2 + $0x28] sm:$0xff]
          %v1689 = vld [vmem:[#allocation2 + $0x30] sm:$0xff]
          %v1690 = vld [vmem:[#allocation2 + $0x38] sm:$0xff]
          %v1691 = vld [vmem:[#allocation2 + $0x40] sm:$0xff]
          %v1692 = vld [vmem:[#allocation2 + $0x48] sm:$0xff]
          %v1693 = vld [vmem:[#allocation2 + $0x50] sm:$0xff]
          %v1694 = vld [vmem:[#allocation2 + $0x58] sm:$0xff]
          %v1695 = vld [vmem:[#allocation2 + $0x60] sm:$0xff]
          %v1696 = vld [vmem:[#allocation2 + $0x68] sm:$0xff]
          %v1697 = vld [vmem:[#allocation2 + $0x70] sm:$0xff]
          %v1698 = vld [vmem:[#allocation2 + $0x78] sm:$0xff]
          %v1699 = vld [vmem:[#allocation2 + $0x80] sm:$0xff]
          %v1700 = vld [vmem:[#allocation2 + $0x88] sm:$0xff]
          %v1701 = vld [vmem:[#allocation2 + $0x90] sm:$0xff]
          %v1702 = vld [vmem:[#allocation2 + $0x98] sm:$0xff]
          %v1703 = vld [vmem:[#allocation2 + $0xa0] sm:$0xff]
          %v1704 = vld [vmem:[#allocation2 + $0xa8] sm:$0xff]
          %v1705 = vld [vmem:[#allocation2 + $0xb0] sm:$0xff]
          %v1706 = vld [vmem:[#allocation2 + $0xb8] sm:$0xff]
          %v1707 = vld [vmem:[#allocation2 + $0xc0] sm:$0xff]
          %v1708 = vld [vmem:[#allocation2 + $0xc8] sm:$0xff]
          %v1709 = vld [vmem:[#allocation2 + $0xd0] sm:$0xff]
          %v1710 = vld [vmem:[#allocation2 + $0xd8] sm:$0xff]
          %v1711 = vld [vmem:[#allocation2 + $0xe0] sm:$0xff]
          %v1712 = vld [vmem:[#allocation2 + $0xe8] sm:$0xff]
          %v1713 = vld [vmem:[#allocation2 + $0xf0] sm:$0xff]
          %v1714 = vld [vmem:[#allocation2 + $0xf8] sm:$0xff]
          %v1715 = vld [vmem:[#allocation3] sm:$0x3]
          %v1717 = vlaneseq
          %v1718 = vshrl.u32 %v1717, 7
          %v1719 = vsub.s32 1, %v1718
          %v1720 = vrot.slane %v1715, %v1719
          %1722 = vmatprep.subr.mxu0 %v1684
          %1723 = vmatpush1.msra.mxu0 %v1683
          %1724 = vmatprep.subr.mxu0 %v1686
          %1725 = vmatpush1.msra.mxu0 %v1685
          %1726 = vmatprep.subr.mxu0 %v1688
          %1727 = vmatpush1.msra.mxu0 %v1687
          %1728 = vmatprep.subr.mxu0 %v1690
          %1729 = vmatpush1.msra.mxu0 %v1689
          %1730 = vmatprep.subr.mxu0 %v1692
          %1731 = vmatpush1.msra.mxu0 %v1691
          %1732 = vmatprep.subr.mxu0 %v1694
          %1733 = vmatpush1.msra.mxu0 %v1693
          %1734 = vmatprep.subr.mxu0 %v1696
          %1735 = vmatpush1.msra.mxu0 %v1695
          %1736 = vmatprep.subr.mxu0 %v1698
          %1737 = vmatpush1.msra.mxu0 %v1697
          %1738 = vmatprep.subr.mxu0 %v1700
          %1739 = vmatpush1.msra.mxu0 %v1699
          %1740 = vmatprep.subr.mxu0 %v1702
          %1741 = vmatpush1.msra.mxu0 %v1701
          %1742 = vmatprep.subr.mxu0 %v1704
          %1743 = vmatpush1.msra.mxu0 %v1703
          %1744 = vmatprep.subr.mxu0 %v1706
          %1745 = vmatpush1.msra.mxu0 %v1705
          %1746 = vmatprep.subr.mxu0 %v1708
          %1747 = vmatpush1.msra.mxu0 %v1707
          %1748 = vmatprep.subr.mxu0 %v1710
          %1749 = vmatpush1.msra.mxu0 %v1709
          %1750 = vmatprep.subr.mxu0 %v1712
          %1751 = vmatpush1.msra.mxu0 %v1711
          %1752 = vmatprep.subr.mxu0 %v1714
          %1753 = vmatpush1.msra.mxu0 %v1713
          %1754 = vmatprep.subr.mxu0 0.0
          %1755 = vmatpush1.msra.mxu0 0.0
          %1756 = vmatprep.subr.mxu0 0.0
          %1757 = vmatpush1.msra.mxu0 0.0
          %1758 = vmatprep.subr.mxu0 0.0
          %1759 = vmatpush1.msra.mxu0 0.0
          %1760 = vmatprep.subr.mxu0 0.0
          %1761 = vmatpush1.msra.mxu0 0.0
          %1762 = vmatprep.subr.mxu0 0.0
          %1763 = vmatpush1.msra.mxu0 0.0
          %1764 = vmatprep.subr.mxu0 0.0
          %1765 = vmatpush1.msra.mxu0 0.0
          %1766 = vmatprep.subr.mxu0 0.0
          %1767 = vmatpush1.msra.mxu0 0.0
          %1768 = vmatprep.subr.mxu0 0.0
          %1769 = vmatpush1.msra.mxu0 0.0
          %1770 = vmatprep.subr.mxu0 0.0
          %1771 = vmatpush1.msra.mxu0 0.0
          %1772 = vmatprep.subr.mxu0 0.0
          %1773 = vmatpush1.msra.mxu0 0.0
          %1774 = vmatprep.subr.mxu0 0.0
          %1775 = vmatpush1.msra.mxu0 0.0
          %1776 = vmatprep.subr.mxu0 0.0
          %1777 = vmatpush1.msra.mxu0 0.0
          %1778 = vmatprep.subr.mxu0 0.0
          %1779 = vmatpush1.msra.mxu0 0.0
          %1780 = vmatprep.subr.mxu0 0.0
          %1781 = vmatpush1.msra.mxu0 0.0
          %1782 = vmatprep.subr.mxu0 0.0
          %1783 = vmatpush1.msra.mxu0 0.0
          %1784 = vmatprep.subr.mxu0 0.0
          %1785 = vmatpush1.msra.mxu0 0.0
          %1786 = vmatprep.mubr.f32.mxu0 0.0
          %1787 = vmatmul.mubr.f32.gmra.mrb[0].mxu0 %v1682
          %v1788 = vpop.f32.mrb[0].mxu0
          %v1789 = vpop.f32.mrb[0].mxu0
          %v1790 = vadd.f32 %v1720, %v1789
          %1791 = vdwg.mxu0
          %1792 = vmax.xlane.f32.xlu0 %v1790
          %v1793 = vpop.xlane.xlu0 %1792
          %v1794 = vsub.f32 %v1790, %v1793
          %v1795 = vmul.f32 %v1794, 1.442695
          %v1796 = vpow.pop %v1795
          %1797 = vadd.xlane.f32.xlu0 %v1796
          %v1798 = vpop.xlane.xlu0 %1797
          %v1799 = vlog2.pop %v1798
          %v1800 = vmul.f32 %v1799, 0.6931472
          %v1801 = vadd.f32 %v1800, %v1793
          %v1802 = vlaneseq
          %v1803 = vand.u32 %v1802, 127
          %v1804 = vld [vmem:[%s6] sm:$0xff]
          %1805 = vset.pattern.permute.xlu0 0
          %1806 = vperm.xlu0 %1805, %v1804
          %v1807 = vpop.permute.xlu0 %1806
          %vm1808 = vcmp.eq.s32.totalorder %v1803, %v1807
          %v1809 = vsel %vm1808, 1, 0
          %v1810 = vcvt.s32.f32 %v1809
          %v1811 = vmul.f32 %v1790, %v1810
          %1812 = vadd.xlane.f32.xlu0 %v1811
          %v1813 = vpop.xlane.xlu0 %1812
          %v1814 = vsub.f32 %v1801, %v1813
          %vm1815 = vcmask 7168
          %v1816 = vsel %vm1815, %v1814, 0.0
          %1817 = vadd.xlane.f32.xlu0 %v1816
          %v1818 = vpop.xlane.xlu0 %1817
          %v1819 = vrot.slane %v1818, 4
          %v1820 = vadd.f32 %v1818, %v1819
          %v1821 = vrot.slane %v1820, 2
          %v1822 = vadd.f32 %v1820, %v1821
          %v1823 = vrot.slane %v1822, 1
          %v1824 = vadd.f32 %v1822, %v1823
          %s1825 = vtos %v1824
          %v1826 = vrcp.pop 8.0
          %s1827 = vtos %v1826
          %s1828 = smul.f32 %s1825, %s1827
          %s1829 = scalar_lea.smem [#allocation10], 0
          %1830 = sst [smem:[%s1829]] %s1828
        $region68: #{memory_meta_learner_forward.1} parent=47 // pred_fallthru
          _
        // Predicated region
        $region69: #{memory_meta_learner_forward.1} parent=47 // pred_check
          %p1831 = pneg %p188
        $region70: #{memory_meta_learner_forward.1} parent=47 // pred_check_branch
          %1833 = sbr.rel (%p1831) target = $region72
        $region71: #{memory_meta_learner_forward.1} parent=47 // pred_region
          %s1835 = ssub.s32 16, 16
          %1836 = vsyncadd [#allocation6], %s1835
          %1839 = dma.smem_to_hbm [#allocation10], 16, %s7, [#allocation6]
        $region72: #{memory_meta_learner_forward.1} parent=47 // pred_fallthru
          _
        // Predicated region
        $region73: #{memory_meta_learner_forward.1} parent=47 // pred_check
          %p1840 = pneg %p188
        $region74: #{memory_meta_learner_forward.1} parent=47 // pred_check_branch
          %1842 = sbr.rel (%p1840) target = $region76
        $region75: #{memory_meta_learner_forward.1} parent=47 // pred_region
          %1843 = dma.done [#allocation6], 16
        $region76: #{memory_meta_learner_forward.1} parent=47 // pred_fallthru
          _
        %1844 = sfence
      $region48: #{memory_meta_learner_forward.1} parent=5 // pred_fallthru
        _
      %p1845 = scmp.le.s32.totalorder 2, %s18
      // Predicated region
      $region77: #{memory_meta_learner_forward.1} parent=5 // pred_check
        %p1846 = pneg %p1845
      $region78: #{memory_meta_learner_forward.1} parent=5 // pred_check_branch
        %1848 = sbr.rel (%p1846) target = $region80
      $region79: #{memory_meta_learner_forward.1} parent=5 // pred_region
        %s1849 = ssub.s32 %s18, 2
      $region80: #{memory_meta_learner_forward.1} parent=5 // pred_fallthru
        _
    $region6: #{memory_meta_learner_forward.1} parent=1 // loop_footer
      %s22 = sadd.s32 1, %s18
    $region7: #{memory_meta_learner_forward.1} parent=1 // loop_footer_branch
      %17 = sbr.rel target = $region3
    $region8: #{memory_meta_learner_forward.1} parent=1 // loop_exit
      _
    %1850 = vsyncpa [#allocation5], 1
    %s1851 = scalar_lea.sflag [#allocation5], 1
    %1852 = vsyncpa %s1851, 1
    %1853 = vsyncpa [#allocation8], 1
    %1854 = vsyncpa [#allocation6], 1
    %s1855 = scalar_lea.sflag [#allocation6], 1
    %1856 = vsyncpa %s1855, 1

</llo_original>
